<compile_context>
chip_gen: v7x
topology: tpu7x:2x2x1
jax: 0.10.0
libtpu: 0.0.40
codegen_flags: <defaults>
</compile_context>

<pallas_src>
import functools
import math

import jax
import jax.numpy as jnp
from jax import lax
from jax.experimental import pallas as pl
from jax.experimental.pallas import tpu as pltpu


def _round_up(x: int, m: int) -> int:
    return ((x + m - 1) // m) * m


def _choose_q_tile(s_q: int, batch: int) -> int:
    """Query-tile size: bounded VMEM; >=2 parallel grid tiles for v7x at B==1."""
    tq = 256
    if batch == 1:
        tq = min(tq, _round_up(pl.cdiv(s_q, 2), 8))
    return max(8, min(tq, _round_up(s_q, 8)))


def _cross_attention_kernel(lat_ref, k_ref, v_ref, wq_ref, bq_ref, wo_ref,
                            bo_ref, out_ref, acc_ref, *, n_head, s_kv, s_kv_p,
                            compute_dtype, approx_recip):
    cdt = compute_dtype
    x = lat_ref[0]                                   # (TQ, d_embed)

    if s_kv_p > s_kv:
        # Additive mask for the zero-padded key columns (do NOT rely on the
        # zero padding alone: exp(0 - max) would give them nonzero weight).
        col = lax.broadcasted_iota(jnp.int32, (1, s_kv_p), 1)
        kv_mask = jnp.where(col < s_kv, 0.0, -1e30).astype(jnp.float32)
    else:
        kv_mask = None

    for h in range(n_head):                          # static, fully unrolled
        # Per-head Q projection (softmax scale already folded into wq / bq).
        qh = (jnp.dot(x, wq_ref[h], preferred_element_type=jnp.float32)
              + bq_ref[h]).astype(cdt)               # (TQ, d_head)
        kh = k_ref[0, h]                             # (S_kv_p, d_head)
        vh = v_ref[0, h]                             # (S_kv_p, d_head)

        # Scores: contract the last dims directly (no materialized K^T).
        s = lax.dot_general(qh, kh, (((1,), (1,)), ((), ())),
                            preferred_element_type=jnp.float32)  # (TQ, S_kv_p)
        if kv_mask is not None:
            s = s + kv_mask
        s = s - jnp.max(s, axis=-1, keepdims=True)   # stable softmax
        p = jnp.exp(s)
        p = (p * pl.reciprocal(jnp.sum(p, axis=-1, keepdims=True),
                               approx=approx_recip)).astype(cdt)

        oh = jnp.dot(p, vh, preferred_element_type=jnp.float32).astype(cdt)
        contrib = jnp.dot(oh, wo_ref[h],
                          preferred_element_type=jnp.float32)    # (TQ, d_embed)
        if h == 0:
            acc_ref[...] = contrib
        else:
            acc_ref[...] += contrib

    out_ref[0] = (acc_ref[...] + bo_ref[...]).astype(out_ref.dtype)


def cross_attention(latent, context, params, *, n_head,
                    compute_dtype=jnp.bfloat16, out_dtype=None, q_tile=None,
                    approx_recip=True, vmem_limit_bytes=None):
    """latent: (B, S_q, d_embed), context: (B, S_kv, d_cross).

    approx_recip=True uses the EUP approximate reciprocal for the softmax
    normalization (inexact vs. exact softmax); pass False for an exact mode.
    """
    B, S_q, d_embed = latent.shape
    Bc, S_kv, d_cross = context.shape
    if Bc != B:
        raise ValueError("batch mismatch between latent and context")
    if d_embed % n_head != 0:
        raise ValueError(f"d_embed={d_embed} is not divisible by n_head={n_head}")
    d_head = d_embed // n_head
    scale = 1.0 / math.sqrt(d_head)
    cdt = jnp.dtype(compute_dtype)
    out_dt = jnp.dtype(out_dtype) if out_dtype is not None else cdt
    f32 = jnp.float32

    TQ = q_tile if q_tile is not None else _choose_q_tile(S_q, B)
    TQ = max(8, min(_round_up(TQ, 8), _round_up(S_q, 8)))
    S_q_p = _round_up(S_q, TQ)
    nq = S_q_p // TQ
    S_kv_p = _round_up(S_kv, 128)        # lane-dense score / P tiles (SD: 77 -> 128)

    # Per-head weight slabs, pre-transposed to (in, out_head). These stay
    # VMEM-resident (constant index_map -> single DMA). Scale folded into Wq/bq.
    wq = jnp.transpose((params["wq"].astype(f32).T * scale)
                       .reshape(d_embed, n_head, d_head),
                       (1, 0, 2)).astype(cdt)                     # (H, d_embed, d_head)
    bq = (params["bq"].astype(f32) * scale).reshape(n_head, 1, d_head)
    wo = params["wo"].astype(f32).T.reshape(n_head, d_head, d_embed).astype(cdt)
    bo = params["bo"].astype(f32).reshape(1, d_embed)

    # K/V projections hoisted out of the kernel (they depend only on context),
    # split per head and zero-padded along S_kv (masked in-kernel).
    def project_kv(w, b):
        t = context.astype(f32) @ w.astype(f32).T + b.astype(f32)  # (B, S_kv, d_embed)
        t = t.reshape(B, S_kv, n_head, d_head).transpose(0, 2, 1, 3)
        return jnp.pad(t, ((0, 0), (0, 0), (0, S_kv_p - S_kv), (0, 0))).astype(cdt)

    k = project_kv(params["wk"], params["bk"])       # (B, H, S_kv_p, d_head)
    v = project_kv(params["wv"], params["bv"])       # (B, H, S_kv_p, d_head)

    lat = latent.astype(cdt)
    if S_q_p != S_q:
        lat = jnp.pad(lat, ((0, 0), (0, S_q_p - S_q), (0, 0)))

    kernel = functools.partial(
        _cross_attention_kernel, n_head=n_head, s_kv=S_kv, s_kv_p=S_kv_p,
        compute_dtype=cdt, approx_recip=approx_recip)

    # Kernel-only cost (K/V projections now run in XLA before the kernel).
    flops = (2 * B * S_q_p * d_embed * d_embed * 2              # Q-proj + O-proj
             + 2 * B * n_head * S_q_p * S_kv_p * d_head * 2)    # Q K^T + P V
    transcendentals = B * n_head * S_q_p * S_kv_p
    bytes_accessed = ((lat.size + k.size + v.size + wq.size + wo.size)
                      * cdt.itemsize
                      + (bq.size + bo.size) * 4
                      + B * S_q_p * d_embed * out_dt.itemsize)

    out = pl.pallas_call(
        kernel,
        out_shape=jax.ShapeDtypeStruct((B, S_q_p, d_embed), out_dt),
        grid_spec=pltpu.PrefetchScalarGridSpec(
            num_scalar_prefetch=0,
            grid=(B, nq),
            in_specs=[
                pl.BlockSpec((1, TQ, d_embed), lambda b, q: (b, q, 0)),           # latent tile
                pl.BlockSpec((1, n_head, S_kv_p, d_head),
                             lambda b, q: (b, 0, 0, 0)),                          # K (per batch)
                pl.BlockSpec((1, n_head, S_kv_p, d_head),
                             lambda b, q: (b, 0, 0, 0)),                          # V (per batch)
                pl.BlockSpec((n_head, d_embed, d_head), lambda b, q: (0, 0, 0)),  # Wq (resident)
                pl.BlockSpec((n_head, 1, d_head), lambda b, q: (0, 0, 0)),        # bq (resident)
                pl.BlockSpec((n_head, d_head, d_embed), lambda b, q: (0, 0, 0)),  # Wo (resident)
                pl.BlockSpec((1, d_embed), lambda b, q: (0, 0)),                  # bo (resident)
            ],
            out_specs=pl.BlockSpec((1, TQ, d_embed), lambda b, q: (b, q, 0)),
            scratch_shapes=[pltpu.VMEM((TQ, d_embed), jnp.float32)],
        ),
        compiler_params=pltpu.CompilerParams(
            dimension_semantics=("parallel", "parallel"),
            vmem_limit_bytes=vmem_limit_bytes),
        cost_estimate=pl.CostEstimate(flops=flops,
                                      transcendentals=transcendentals,
                                      bytes_accessed=bytes_accessed),
    )(lat, k, v, wq, bq, wo, bo)

    if S_q_p != S_q:
        out = out[:, :S_q, :]
    return out


def init_params(key, d_embed, d_cross):
    """Deterministic init matching nn.Linear shapes (weight: (out, in), bias: (out,))."""
    ks = jax.random.split(key, 8)

    def linear(kw, kb, out_f, in_f):
        bound = 1.0 / math.sqrt(in_f)
        w = jax.random.uniform(kw, (out_f, in_f), jnp.float32, -bound, bound)
        b = jax.random.uniform(kb, (out_f,), jnp.float32, -bound, bound)
        return w, b

    wq, bq = linear(ks[0], ks[1], d_embed, d_embed)
    wk, bk = linear(ks[2], ks[3], d_embed, d_cross)
    wv, bv = linear(ks[4], ks[5], d_embed, d_cross)
    wo, bo = linear(ks[6], ks[7], d_embed, d_embed)
    return dict(wq=wq, bq=bq, wk=wk, bk=bk, wv=wv, bv=bv, wo=wo, bo=bo)


def reference(latent, context, params, *, n_head):
    """Pure-JAX reference of the intended cross-attention forward."""
    B, S_q, d_embed = latent.shape
    d_head = d_embed // n_head
    q = latent @ params["wq"].T + params["bq"]
    k = context @ params["wk"].T + params["bk"]
    v = context @ params["wv"].T + params["bv"]

    def split(t):
        return t.reshape(B, -1, n_head, d_head).transpose(0, 2, 1, 3)

    q, k, v = split(q), split(k), split(v)
    s = jnp.einsum("bhqd,bhkd->bhqk", q, k) / math.sqrt(d_head)
    p = jax.nn.softmax(s, axis=-1)
    o = jnp.einsum("bhqk,bhkd->bhqd", p, v)
    o = o.transpose(0, 2, 1, 3).reshape(B, S_q, d_embed)
    return o @ params["wo"].T + params["bo"]


if __name__ == "__main__":
    n_head, d_embed, d_cross = 4, 32, 16
    B, S_q, S_kv = 2, 16, 8

    key = jax.random.PRNGKey(0)
    k_lat, k_ctx, k_par = jax.random.split(key, 3)
    latent = jax.random.normal(k_lat, (B, S_q, d_embed), jnp.float32)
    context = jax.random.normal(k_ctx, (B, S_kv, d_cross), jnp.float32)
    params = init_params(k_par, d_embed, d_cross)

    ref = reference(latent, context, params, n_head=n_head)

    # "Exact" mode: f32 MXU operands, exact softmax reciprocal, f32 output.
    out_f32 = jax.block_until_ready(
        cross_attention(latent, context, params, n_head=n_head,
                        compute_dtype=jnp.float32, out_dtype=jnp.float32,
                        approx_recip=False))
    assert out_f32.shape == (B, S_q, d_embed)
    assert jnp.allclose(out_f32, ref, atol=5e-3, rtol=5e-3), "f32 mismatch vs reference"

    # Default path: bf16 MXU operands and bf16 output (recommended on v6e/v7x).
    out_bf16 = jax.block_until_ready(
        cross_attention(latent, context, params, n_head=n_head))
    assert out_bf16.shape == (B, S_q, d_embed)
    assert out_bf16.dtype == jnp.bfloat16
    assert jnp.allclose(out_bf16.astype(jnp.float32), ref,
                        atol=5e-2, rtol=5e-2), "bf16 mismatch vs reference"

    print("KERNEL_OK")
</pallas_src>

<mosaic_0001>
module attributes {stable_mosaic.version = 11 : i64} {
  func.func @_cross_attention_kernel(%arg0: i32, %arg1: i32, %arg2: memref<1x16x32xf32, #tpu.memory_space<vmem>>, %arg3: memref<1x4x128x8xf32, #tpu.memory_space<vmem>>, %arg4: memref<1x4x128x8xf32, #tpu.memory_space<vmem>>, %arg5: memref<4x32x8xf32, #tpu.memory_space<vmem>>, %arg6: memref<4x1x8xf32, #tpu.memory_space<vmem>>, %arg7: memref<4x8x32xf32, #tpu.memory_space<vmem>>, %arg8: memref<1x32xf32, #tpu.memory_space<vmem>>, %arg9: memref<1x16x32xf32, #tpu.memory_space<vmem>>, %arg10: memref<16x32xf32, #tpu.memory_space<vmem>>) attributes {dimension_semantics = [#tpu.dimension_semantics<parallel>, #tpu.dimension_semantics<parallel>], iteration_bounds = array<i64: 2, 1>, scalar_prefetch = 0 : i64, scratch_operands = 1 : i64, tpu.core_type = #tpu.core_type<tc>, window_params = [{transform_indices = @transform_0, window_bounds = array<i64: 1, 16, 32>}, {transform_indices = @transform_1, window_bounds = array<i64: 1, 4, 128, 8>}, {transform_indices = @transform_2, window_bounds = array<i64: 1, 4, 128, 8>}, {pipeline_mode = #tpu.pipeline_mode<synchronous>, transform_indices = @transform_3, window_bounds = array<i64: 4, 32, 8>}, {pipeline_mode = #tpu.pipeline_mode<synchronous>, transform_indices = @transform_4, window_bounds = array<i64: 4, 1, 8>}, {pipeline_mode = #tpu.pipeline_mode<synchronous>, transform_indices = @transform_5, window_bounds = array<i64: 4, 8, 32>}, {pipeline_mode = #tpu.pipeline_mode<synchronous>, transform_indices = @transform_6, window_bounds = array<i64: 1, 32>}, {transform_indices = @transform_7, window_bounds = array<i64: 1, 16, 32>}]} {
    %c0 = arith.constant 0 : index
    %c0_0 = arith.constant 0 : index
    %c0_1 = arith.constant 0 : index
    %0 = vector.load %arg2[%c0, %c0_0, %c0_1] : memref<1x16x32xf32, #tpu.memory_space<vmem>>, vector<1x16x32xf32>
    %1 = vector.shape_cast %0 : vector<1x16x32xf32> to vector<16x32xf32>
    %2 = tpu.iota {dimensions = array<i32: 1>} : vector<1x128xi32>
    %c8_i32 = arith.constant 8 : i32
    %3 = vector.broadcast %c8_i32 : i32 to vector<1x128xi32>
    %4 = arith.cmpi slt, %2, %3 : vector<1x128xi32>
    %cst = arith.constant 0.000000e+00 : f32
    %cst_2 = arith.constant -1.000000e+30 : f32
    %5 = vector.broadcast %cst : f32 to vector<1x128xf32>
    %6 = vector.broadcast %cst_2 : f32 to vector<1x128xf32>
    %7 = arith.select %4, %5, %6 : vector<1x128xi1>, vector<1x128xf32>
    %c0_3 = arith.constant 0 : index
    %c0_4 = arith.constant 0 : index
    %c0_5 = arith.constant 0 : index
    %8 = vector.load %arg5[%c0_3, %c0_4, %c0_5] : memref<4x32x8xf32, #tpu.memory_space<vmem>>, vector<1x32x8xf32>
    %9 = vector.shape_cast %8 : vector<1x32x8xf32> to vector<32x8xf32>
    %cst_6 = arith.constant dense<0.000000e+00> : vector<16x8xf32>
    %10 = tpu.matmul %1, %9, %cst_6 {dimension_numbers = #tpu.dot_dimension_numbers<[1], [0], [0], [1], [0, 0, 1, 1], [], []>} : vector<16x32xf32>, vector<32x8xf32>, vector<16x8xf32> -> vector<16x8xf32>
    %c0_7 = arith.constant 0 : index
    %c0_8 = arith.constant 0 : index
    %c0_9 = arith.constant 0 : index
    %11 = vector.load %arg6[%c0_7, %c0_8, %c0_9] : memref<4x1x8xf32, #tpu.memory_space<vmem>>, vector<1x1x8xf32>
    %12 = vector.shape_cast %11 : vector<1x1x8xf32> to vector<1x8xf32>
    %13 = vector.broadcast %12 : vector<1x8xf32> to vector<16x8xf32>
    %14 = arith.addf %10, %13 : vector<16x8xf32>
    %c0_10 = arith.constant 0 : index
    %c0_11 = arith.constant 0 : index
    %c0_12 = arith.constant 0 : index
    %c0_13 = arith.constant 0 : index
    %15 = vector.load %arg3[%c0_10, %c0_11, %c0_12, %c0_13] : memref<1x4x128x8xf32, #tpu.memory_space<vmem>>, vector<1x1x128x8xf32>
    %16 = vector.shape_cast %15 : vector<1x1x128x8xf32> to vector<128x8xf32>
    %c0_14 = arith.constant 0 : index
    %c0_15 = arith.constant 0 : index
    %c0_16 = arith.constant 0 : index
    %c0_17 = arith.constant 0 : index
    %17 = vector.load %arg4[%c0_14, %c0_15, %c0_16, %c0_17] : memref<1x4x128x8xf32, #tpu.memory_space<vmem>>, vector<1x1x128x8xf32>
    %18 = vector.shape_cast %17 : vector<1x1x128x8xf32> to vector<128x8xf32>
    %cst_18 = arith.constant dense<0.000000e+00> : vector<16x128xf32>
    %19 = tpu.matmul %14, %16, %cst_18 {dimension_numbers = #tpu.dot_dimension_numbers<[1], [1], [0], [0], [0, 0, 1, 0], [], []>} : vector<16x8xf32>, vector<128x8xf32>, vector<16x128xf32> -> vector<16x128xf32>
    %20 = vector.broadcast %7 : vector<1x128xf32> to vector<16x128xf32>
    %21 = arith.addf %19, %20 : vector<16x128xf32>
    %cst_19 = arith.constant dense<0xFF800000> : vector<16xf32>
    %22 = vector.multi_reduction <maximumf>, %21, %cst_19 [1] : vector<16x128xf32> to vector<16xf32>
    %23 = vector.shape_cast %22 : vector<16xf32> to vector<16x1xf32>
    %24 = vector.broadcast %23 : vector<16x1xf32> to vector<16x128xf32>
    %25 = arith.subf %21, %24 : vector<16x128xf32>
    %26 = math.exp %25 : vector<16x128xf32>
    %cst_20 = arith.constant dense<0.000000e+00> : vector<16xf32>
    %27 = vector.multi_reduction <add>, %26, %cst_20 [1] : vector<16x128xf32> to vector<16xf32>
    %28 = vector.shape_cast %27 : vector<16xf32> to vector<16x1xf32>
    %29 = tpu.reciprocal %28 : vector<16x1xf32> -> vector<16x1xf32>
    %30 = vector.broadcast %29 : vector<16x1xf32> to vector<16x128xf32>
    %31 = arith.mulf %26, %30 : vector<16x128xf32>
    %cst_21 = arith.constant dense<0.000000e+00> : vector<16x8xf32>
    %32 = tpu.matmul %31, %18, %cst_21 {dimension_numbers = #tpu.dot_dimension_numbers<[1], [0], [0], [1], [0, 0, 1, 1], [], []>} : vector<16x128xf32>, vector<128x8xf32>, vector<16x8xf32> -> vector<16x8xf32>
    %c0_22 = arith.constant 0 : index
    %c0_23 = arith.constant 0 : index
    %c0_24 = arith.constant 0 : index
    %33 = vector.load %arg7[%c0_22, %c0_23, %c0_24] : memref<4x8x32xf32, #tpu.memory_space<vmem>>, vector<1x8x32xf32>
    %34 = vector.shape_cast %33 : vector<1x8x32xf32> to vector<8x32xf32>
    %cst_25 = arith.constant dense<0.000000e+00> : vector<16x32xf32>
    %35 = tpu.matmul %32, %34, %cst_25 {dimension_numbers = #tpu.dot_dimension_numbers<[1], [0], [0], [1], [0, 0, 1, 1], [], []>} : vector<16x8xf32>, vector<8x32xf32>, vector<16x32xf32> -> vector<16x32xf32>
    %c0_26 = arith.constant 0 : index
    %c0_27 = arith.constant 0 : index
    %36 = vector.load %arg10[%c0_26, %c0_27] : memref<16x32xf32, #tpu.memory_space<vmem>>, vector<16x32xf32>
    tpu.vector_store %arg10[%c0_26, %c0_27], %35 {strides = array<i32>} : memref<16x32xf32, #tpu.memory_space<vmem>>, vector<16x32xf32>,
    %c1 = arith.constant 1 : index
    %c0_28 = arith.constant 0 : index
    %c0_29 = arith.constant 0 : index
    %37 = vector.load %arg5[%c1, %c0_28, %c0_29] : memref<4x32x8xf32, #tpu.memory_space<vmem>>, vector<1x32x8xf32>
    %38 = vector.shape_cast %37 : vector<1x32x8xf32> to vector<32x8xf32>
    %cst_30 = arith.constant dense<0.000000e+00> : vector<16x8xf32>
    %39 = tpu.matmul %1, %38, %cst_30 {dimension_numbers = #tpu.dot_dimension_numbers<[1], [0], [0], [1], [0, 0, 1, 1], [], []>} : vector<16x32xf32>, vector<32x8xf32>, vector<16x8xf32> -> vector<16x8xf32>
    %c1_31 = arith.constant 1 : index
    %c0_32 = arith.constant 0 : index
    %c0_33 = arith.constant 0 : index
    %40 = vector.load %arg6[%c1_31, %c0_32, %c0_33] : memref<4x1x8xf32, #tpu.memory_space<vmem>>, vector<1x1x8xf32>
    %41 = vector.shape_cast %40 : vector<1x1x8xf32> to vector<1x8xf32>
    %42 = vector.broadcast %41 : vector<1x8xf32> to vector<16x8xf32>
    %43 = arith.addf %39, %42 : vector<16x8xf32>
    %c0_34 = arith.constant 0 : index
    %c1_35 = arith.constant 1 : index
    %c0_36 = arith.constant 0 : index
    %c0_37 = arith.constant 0 : index
    %44 = vector.load %arg3[%c0_34, %c1_35, %c0_36, %c0_37] : memref<1x4x128x8xf32, #tpu.memory_space<vmem>>, vector<1x1x128x8xf32>
    %45 = vector.shape_cast %44 : vector<1x1x128x8xf32> to vector<128x8xf32>
    %c0_38 = arith.constant 0 : index
    %c1_39 = arith.constant 1 : index
    %c0_40 = arith.constant 0 : index
    %c0_41 = arith.constant 0 : index
    %46 = vector.load %arg4[%c0_38, %c1_39, %c0_40, %c0_41] : memref<1x4x128x8xf32, #tpu.memory_space<vmem>>, vector<1x1x128x8xf32>
    %47 = vector.shape_cast %46 : vector<1x1x128x8xf32> to vector<128x8xf32>
    %cst_42 = arith.constant dense<0.000000e+00> : vector<16x128xf32>
    %48 = tpu.matmul %43, %45, %cst_42 {dimension_numbers = #tpu.dot_dimension_numbers<[1], [1], [0], [0], [0, 0, 1, 0], [], []>} : vector<16x8xf32>, vector<128x8xf32>, vector<16x128xf32> -> vector<16x128xf32>
    %49 = vector.broadcast %7 : vector<1x128xf32> to vector<16x128xf32>
    %50 = arith.addf %48, %49 : vector<16x128xf32>
    %cst_43 = arith.constant dense<0xFF800000> : vector<16xf32>
    %51 = vector.multi_reduction <maximumf>, %50, %cst_43 [1] : vector<16x128xf32> to vector<16xf32>
    %52 = vector.shape_cast %51 : vector<16xf32> to vector<16x1xf32>
    %53 = vector.broadcast %52 : vector<16x1xf32> to vector<16x128xf32>
    %54 = arith.subf %50, %53 : vector<16x128xf32>
    %55 = math.exp %54 : vector<16x128xf32>
    %cst_44 = arith.constant dense<0.000000e+00> : vector<16xf32>
    %56 = vector.multi_reduction <add>, %55, %cst_44 [1] : vector<16x128xf32> to vector<16xf32>
    %57 = vector.shape_cast %56 : vector<16xf32> to vector<16x1xf32>
    %58 = tpu.reciprocal %57 : vector<16x1xf32> -> vector<16x1xf32>
    %59 = vector.broadcast %58 : vector<16x1xf32> to vector<16x128xf32>
    %60 = arith.mulf %55, %59 : vector<16x128xf32>
    %cst_45 = arith.constant dense<0.000000e+00> : vector<16x8xf32>
    %61 = tpu.matmul %60, %47, %cst_45 {dimension_numbers = #tpu.dot_dimension_numbers<[1], [0], [0], [1], [0, 0, 1, 1], [], []>} : vector<16x128xf32>, vector<128x8xf32>, vector<16x8xf32> -> vector<16x8xf32>
    %c1_46 = arith.constant 1 : index
    %c0_47 = arith.constant 0 : index
    %c0_48 = arith.constant 0 : index
    %62 = vector.load %arg7[%c1_46, %c0_47, %c0_48] : memref<4x8x32xf32, #tpu.memory_space<vmem>>, vector<1x8x32xf32>
    %63 = vector.shape_cast %62 : vector<1x8x32xf32> to vector<8x32xf32>
    %cst_49 = arith.constant dense<0.000000e+00> : vector<16x32xf32>
    %64 = tpu.matmul %61, %63, %cst_49 {dimension_numbers = #tpu.dot_dimension_numbers<[1], [0], [0], [1], [0, 0, 1, 1], [], []>} : vector<16x8xf32>, vector<8x32xf32>, vector<16x32xf32> -> vector<16x32xf32>
    %c0_50 = arith.constant 0 : index
    %c0_51 = arith.constant 0 : index
    %65 = vector.load %arg10[%c0_50, %c0_51] : memref<16x32xf32, #tpu.memory_space<vmem>>, vector<16x32xf32>
    %66 = arith.addf %65, %64 : vector<16x32xf32>
    %c0_52 = arith.constant 0 : index
    %c0_53 = arith.constant 0 : index
    %67 = vector.load %arg10[%c0_52, %c0_53] : memref<16x32xf32, #tpu.memory_space<vmem>>, vector<16x32xf32>
    tpu.vector_store %arg10[%c0_52, %c0_53], %66 {strides = array<i32>} : memref<16x32xf32, #tpu.memory_space<vmem>>, vector<16x32xf32>,
    %c2 = arith.constant 2 : index
    %c0_54 = arith.constant 0 : index
    %c0_55 = arith.constant 0 : index
    %68 = vector.load %arg5[%c2, %c0_54, %c0_55] : memref<4x32x8xf32, #tpu.memory_space<vmem>>, vector<1x32x8xf32>
    %69 = vector.shape_cast %68 : vector<1x32x8xf32> to vector<32x8xf32>
    %cst_56 = arith.constant dense<0.000000e+00> : vector<16x8xf32>
    %70 = tpu.matmul %1, %69, %cst_56 {dimension_numbers = #tpu.dot_dimension_numbers<[1], [0], [0], [1], [0, 0, 1, 1], [], []>} : vector<16x32xf32>, vector<32x8xf32>, vector<16x8xf32> -> vector<16x8xf32>
    %c2_57 = arith.constant 2 : index
    %c0_58 = arith.constant 0 : index
    %c0_59 = arith.constant 0 : index
    %71 = vector.load %arg6[%c2_57, %c0_58, %c0_59] : memref<4x1x8xf32, #tpu.memory_space<vmem>>, vector<1x1x8xf32>
    %72 = vector.shape_cast %71 : vector<1x1x8xf32> to vector<1x8xf32>
    %73 = vector.broadcast %72 : vector<1x8xf32> to vector<16x8xf32>
    %74 = arith.addf %70, %73 : vector<16x8xf32>
    %c0_60 = arith.constant 0 : index
    %c2_61 = arith.constant 2 : index
    %c0_62 = arith.constant 0 : index
    %c0_63 = arith.constant 0 : index
    %75 = vector.load %arg3[%c0_60, %c2_61, %c0_62, %c0_63] : memref<1x4x128x8xf32, #tpu.memory_space<vmem>>, vector<1x1x128x8xf32>
    %76 = vector.shape_cast %75 : vector<1x1x128x8xf32> to vector<128x8xf32>
    %c0_64 = arith.constant 0 : index
    %c2_65 = arith.constant 2 : index
    %c0_66 = arith.constant 0 : index
    %c0_67 = arith.constant 0 : index
    %77 = vector.load %arg4[%c0_64, %c2_65, %c0_66, %c0_67] : memref<1x4x128x8xf32, #tpu.memory_space<vmem>>, vector<1x1x128x8xf32>
    %78 = vector.shape_cast %77 : vector<1x1x128x8xf32> to vector<128x8xf32>
    %cst_68 = arith.constant dense<0.000000e+00> : vector<16x128xf32>
    %79 = tpu.matmul %74, %76, %cst_68 {dimension_numbers = #tpu.dot_dimension_numbers<[1], [1], [0], [0], [0, 0, 1, 0], [], []>} : vector<16x8xf32>, vector<128x8xf32>, vector<16x128xf32> -> vector<16x128xf32>
    %80 = vector.broadcast %7 : vector<1x128xf32> to vector<16x128xf32>
    %81 = arith.addf %79, %80 : vector<16x128xf32>
    %cst_69 = arith.constant dense<0xFF800000> : vector<16xf32>
    %82 = vector.multi_reduction <maximumf>, %81, %cst_69 [1] : vector<16x128xf32> to vector<16xf32>
    %83 = vector.shape_cast %82 : vector<16xf32> to vector<16x1xf32>
    %84 = vector.broadcast %83 : vector<16x1xf32> to vector<16x128xf32>
    %85 = arith.subf %81, %84 : vector<16x128xf32>
    %86 = math.exp %85 : vector<16x128xf32>
    %cst_70 = arith.constant dense<0.000000e+00> : vector<16xf32>
    %87 = vector.multi_reduction <add>, %86, %cst_70 [1] : vector<16x128xf32> to vector<16xf32>
    %88 = vector.shape_cast %87 : vector<16xf32> to vector<16x1xf32>
    %89 = tpu.reciprocal %88 : vector<16x1xf32> -> vector<16x1xf32>
    %90 = vector.broadcast %89 : vector<16x1xf32> to vector<16x128xf32>
    %91 = arith.mulf %86, %90 : vector<16x128xf32>
    %cst_71 = arith.constant dense<0.000000e+00> : vector<16x8xf32>
    %92 = tpu.matmul %91, %78, %cst_71 {dimension_numbers = #tpu.dot_dimension_numbers<[1], [0], [0], [1], [0, 0, 1, 1], [], []>} : vector<16x128xf32>, vector<128x8xf32>, vector<16x8xf32> -> vector<16x8xf32>
    %c2_72 = arith.constant 2 : index
    %c0_73 = arith.constant 0 : index
    %c0_74 = arith.constant 0 : index
    %93 = vector.load %arg7[%c2_72, %c0_73, %c0_74] : memref<4x8x32xf32, #tpu.memory_space<vmem>>, vector<1x8x32xf32>
    %94 = vector.shape_cast %93 : vector<1x8x32xf32> to vector<8x32xf32>
    %cst_75 = arith.constant dense<0.000000e+00> : vector<16x32xf32>
    %95 = tpu.matmul %92, %94, %cst_75 {dimension_numbers = #tpu.dot_dimension_numbers<[1], [0], [0], [1], [0, 0, 1, 1], [], []>} : vector<16x8xf32>, vector<8x32xf32>, vector<16x32xf32> -> vector<16x32xf32>
    %c0_76 = arith.constant 0 : index
    %c0_77 = arith.constant 0 : index
    %96 = vector.load %arg10[%c0_76, %c0_77] : memref<16x32xf32, #tpu.memory_space<vmem>>, vector<16x32xf32>
    %97 = arith.addf %96, %95 : vector<16x32xf32>
    %c0_78 = arith.constant 0 : index
    %c0_79 = arith.constant 0 : index
    %98 = vector.load %arg10[%c0_78, %c0_79] : memref<16x32xf32, #tpu.memory_space<vmem>>, vector<16x32xf32>
    tpu.vector_store %arg10[%c0_78, %c0_79], %97 {strides = array<i32>} : memref<16x32xf32, #tpu.memory_space<vmem>>, vector<16x32xf32>,
    %c3 = arith.constant 3 : index
    %c0_80 = arith.constant 0 : index
    %c0_81 = arith.constant 0 : index
    %99 = vector.load %arg5[%c3, %c0_80, %c0_81] : memref<4x32x8xf32, #tpu.memory_space<vmem>>, vector<1x32x8xf32>
    %100 = vector.shape_cast %99 : vector<1x32x8xf32> to vector<32x8xf32>
    %cst_82 = arith.constant dense<0.000000e+00> : vector<16x8xf32>
    %101 = tpu.matmul %1, %100, %cst_82 {dimension_numbers = #tpu.dot_dimension_numbers<[1], [0], [0], [1], [0, 0, 1, 1], [], []>} : vector<16x32xf32>, vector<32x8xf32>, vector<16x8xf32> -> vector<16x8xf32>
    %c3_83 = arith.constant 3 : index
    %c0_84 = arith.constant 0 : index
    %c0_85 = arith.constant 0 : index
    %102 = vector.load %arg6[%c3_83, %c0_84, %c0_85] : memref<4x1x8xf32, #tpu.memory_space<vmem>>, vector<1x1x8xf32>
    %103 = vector.shape_cast %102 : vector<1x1x8xf32> to vector<1x8xf32>
    %104 = vector.broadcast %103 : vector<1x8xf32> to vector<16x8xf32>
    %105 = arith.addf %101, %104 : vector<16x8xf32>
    %c0_86 = arith.constant 0 : index
    %c3_87 = arith.constant 3 : index
    %c0_88 = arith.constant 0 : index
    %c0_89 = arith.constant 0 : index
    %106 = vector.load %arg3[%c0_86, %c3_87, %c0_88, %c0_89] : memref<1x4x128x8xf32, #tpu.memory_space<vmem>>, vector<1x1x128x8xf32>
    %107 = vector.shape_cast %106 : vector<1x1x128x8xf32> to vector<128x8xf32>
    %c0_90 = arith.constant 0 : index
    %c3_91 = arith.constant 3 : index
    %c0_92 = arith.constant 0 : index
    %c0_93 = arith.constant 0 : index
    %108 = vector.load %arg4[%c0_90, %c3_91, %c0_92, %c0_93] : memref<1x4x128x8xf32, #tpu.memory_space<vmem>>, vector<1x1x128x8xf32>
    %109 = vector.shape_cast %108 : vector<1x1x128x8xf32> to vector<128x8xf32>
    %cst_94 = arith.constant dense<0.000000e+00> : vector<16x128xf32>
    %110 = tpu.matmul %105, %107, %cst_94 {dimension_numbers = #tpu.dot_dimension_numbers<[1], [1], [0], [0], [0, 0, 1, 0], [], []>} : vector<16x8xf32>, vector<128x8xf32>, vector<16x128xf32> -> vector<16x128xf32>
    %111 = vector.broadcast %7 : vector<1x128xf32> to vector<16x128xf32>
    %112 = arith.addf %110, %111 : vector<16x128xf32>
    %cst_95 = arith.constant dense<0xFF800000> : vector<16xf32>
    %113 = vector.multi_reduction <maximumf>, %112, %cst_95 [1] : vector<16x128xf32> to vector<16xf32>
    %114 = vector.shape_cast %113 : vector<16xf32> to vector<16x1xf32>
    %115 = vector.broadcast %114 : vector<16x1xf32> to vector<16x128xf32>
    %116 = arith.subf %112, %115 : vector<16x128xf32>
    %117 = math.exp %116 : vector<16x128xf32>
    %cst_96 = arith.constant dense<0.000000e+00> : vector<16xf32>
    %118 = vector.multi_reduction <add>, %117, %cst_96 [1] : vector<16x128xf32> to vector<16xf32>
    %119 = vector.shape_cast %118 : vector<16xf32> to vector<16x1xf32>
    %120 = tpu.reciprocal %119 : vector<16x1xf32> -> vector<16x1xf32>
    %121 = vector.broadcast %120 : vector<16x1xf32> to vector<16x128xf32>
    %122 = arith.mulf %117, %121 : vector<16x128xf32>
    %cst_97 = arith.constant dense<0.000000e+00> : vector<16x8xf32>
    %123 = tpu.matmul %122, %109, %cst_97 {dimension_numbers = #tpu.dot_dimension_numbers<[1], [0], [0], [1], [0, 0, 1, 1], [], []>} : vector<16x128xf32>, vector<128x8xf32>, vector<16x8xf32> -> vector<16x8xf32>
    %c3_98 = arith.constant 3 : index
    %c0_99 = arith.constant 0 : index
    %c0_100 = arith.constant 0 : index
    %124 = vector.load %arg7[%c3_98, %c0_99, %c0_100] : memref<4x8x32xf32, #tpu.memory_space<vmem>>, vector<1x8x32xf32>
    %125 = vector.shape_cast %124 : vector<1x8x32xf32> to vector<8x32xf32>
    %cst_101 = arith.constant dense<0.000000e+00> : vector<16x32xf32>
    %126 = tpu.matmul %123, %125, %cst_101 {dimension_numbers = #tpu.dot_dimension_numbers<[1], [0], [0], [1], [0, 0, 1, 1], [], []>} : vector<16x8xf32>, vector<8x32xf32>, vector<16x32xf32> -> vector<16x32xf32>
    %c0_102 = arith.constant 0 : index
    %c0_103 = arith.constant 0 : index
    %127 = vector.load %arg10[%c0_102, %c0_103] : memref<16x32xf32, #tpu.memory_space<vmem>>, vector<16x32xf32>
    %128 = arith.addf %127, %126 : vector<16x32xf32>
    %c0_104 = arith.constant 0 : index
    %c0_105 = arith.constant 0 : index
    %129 = vector.load %arg10[%c0_104, %c0_105] : memref<16x32xf32, #tpu.memory_space<vmem>>, vector<16x32xf32>
    tpu.vector_store %arg10[%c0_104, %c0_105], %128 {strides = array<i32>} : memref<16x32xf32, #tpu.memory_space<vmem>>, vector<16x32xf32>,
    %c0_106 = arith.constant 0 : index
    %c0_107 = arith.constant 0 : index
    %130 = vector.load %arg10[%c0_106, %c0_107] : memref<16x32xf32, #tpu.memory_space<vmem>>, vector<16x32xf32>
    %c0_108 = arith.constant 0 : index
    %c0_109 = arith.constant 0 : index
    %131 = vector.load %arg8[%c0_108, %c0_109] : memref<1x32xf32, #tpu.memory_space<vmem>>, vector<1x32xf32>
    %132 = vector.broadcast %131 : vector<1x32xf32> to vector<16x32xf32>
    %133 = arith.addf %130, %132 : vector<16x32xf32>
    %c0_110 = arith.constant 0 : index
    %c0_111 = arith.constant 0 : index
    %c0_112 = arith.constant 0 : index
    %134 = vector.load %arg9[%c0_110, %c0_111, %c0_112] : memref<1x16x32xf32, #tpu.memory_space<vmem>>, vector<1x16x32xf32>
    %135 = vector.shape_cast %134 : vector<1x16x32xf32> to vector<16x32xf32>
    %136 = vector.shape_cast %133 : vector<16x32xf32> to vector<1x16x32xf32>
    tpu.vector_store %arg9[%c0_110, %c0_111, %c0_112], %136 {strides = array<i32>} : memref<1x16x32xf32, #tpu.memory_space<vmem>>, vector<1x16x32xf32>,
    return
  }
  func.func @transform_0(%arg0: i32, %arg1: i32) -> (i32, i32, i32) {
    %c0_i32 = arith.constant 0 : i32
    %c0_i32_0 = arith.constant 0 : i32
    return %arg0, %arg1, %c0_i32 : i32, i32, i32
  }
  func.func @transform_1(%arg0: i32, %arg1: i32) -> (i32, i32, i32, i32) {
    %c0_i32 = arith.constant 0 : i32
    %c0_i32_0 = arith.constant 0 : i32
    %c0_i32_1 = arith.constant 0 : i32
    %c0_i32_2 = arith.constant 0 : i32
    return %arg0, %c0_i32, %c0_i32_0, %c0_i32_1 : i32, i32, i32, i32
  }
  func.func @transform_2(%arg0: i32, %arg1: i32) -> (i32, i32, i32, i32) {
    %c0_i32 = arith.constant 0 : i32
    %c0_i32_0 = arith.constant 0 : i32
    %c0_i32_1 = arith.constant 0 : i32
    %c0_i32_2 = arith.constant 0 : i32
    return %arg0, %c0_i32, %c0_i32_0, %c0_i32_1 : i32, i32, i32, i32
  }
  func.func @transform_3(%arg0: i32, %arg1: i32) -> (i32, i32, i32) {
    %c0_i32 = arith.constant 0 : i32
    %c0_i32_0 = arith.constant 0 : i32
    %c0_i32_1 = arith.constant 0 : i32
    %c0_i32_2 = arith.constant 0 : i32
    return %c0_i32, %c0_i32_0, %c0_i32_1 : i32, i32, i32
  }
  func.func @transform_4(%arg0: i32, %arg1: i32) -> (i32, i32, i32) {
    %c0_i32 = arith.constant 0 : i32
    %c0_i32_0 = arith.constant 0 : i32
    %c0_i32_1 = arith.constant 0 : i32
    %c0_i32_2 = arith.constant 0 : i32
    return %c0_i32, %c0_i32_0, %c0_i32_1 : i32, i32, i32
  }
  func.func @transform_5(%arg0: i32, %arg1: i32) -> (i32, i32, i32) {
    %c0_i32 = arith.constant 0 : i32
    %c0_i32_0 = arith.constant 0 : i32
    %c0_i32_1 = arith.constant 0 : i32
    %c0_i32_2 = arith.constant 0 : i32
    return %c0_i32, %c0_i32_0, %c0_i32_1 : i32, i32, i32
  }
  func.func @transform_6(%arg0: i32, %arg1: i32) -> (i32, i32) {
    %c0_i32 = arith.constant 0 : i32
    %c0_i32_0 = arith.constant 0 : i32
    %c0_i32_1 = arith.constant 0 : i32
    return %c0_i32, %c0_i32_0 : i32, i32
  }
  func.func @transform_7(%arg0: i32, %arg1: i32) -> (i32, i32, i32) {
    %c0_i32 = arith.constant 0 : i32
    %c0_i32_0 = arith.constant 0 : i32
    return %arg0, %arg1, %c0_i32 : i32, i32, i32
  }
}

</mosaic_0001>

<llo_original>
// kernel: tpu_custom_call.1
$region0: #{tpu_custom_call.1}
  #allocation0 [shape = 'u32[]', space=smem, size = 0x4, offset = 0x4, fixed_abs, tag = 'smem constant byte address 0x4 - core index']
  #allocation1 [shape = 'u32[144,128]{1,0:T(1,128)}', space=vmem, size = 0x12000, scoped, tag = 'internal scratch']
  #allocation2 [shape = 'f32[16,32]{1,0:T(8,128)}', space=vmem, size = 0x2000, scoped, tag = 'scratch operand']
  %s0 = inlined_call_operand.vmem [shape: f32[2,16,32], index: 0, kind: input, shape index: {}]
  %s1 = inlined_call_operand.vmem [shape: f32[2,4,128,8], index: 1, kind: input, shape index: {}]
  %s2 = inlined_call_operand.vmem [shape: f32[2,4,128,8], index: 2, kind: input, shape index: {}]
  %s3 = inlined_call_operand.vmem [shape: f32[4,32,8], index: 3, kind: input, shape index: {}]
  %s4 = inlined_call_operand.vmem [shape: f32[4,1,8], index: 4, kind: input, shape index: {}]
  %s5 = inlined_call_operand.vmem [shape: f32[4,8,32], index: 5, kind: input, shape index: {}]
  %s6 = inlined_call_operand.vmem [shape: f32[1,32], index: 6, kind: input, shape index: {}]
  %s7 = inlined_call_operand.hbm [shape: f32[2,16,32], index: 7, kind: output, shape index: {}]
  %s8 = sld [smem:[#allocation0]]
  $region61: #{tpu_custom_call.1} parent=0
    _
  %s10 = ssub.s32 1, %s8
  %s11 = scalar_select 0, %s10, %s8
  $region1: #{tpu_custom_call.1} parent=0
    #allocation3 [shape = 'u8[16384]{0}', space=vmem, size = 0x4000, scoped, tag = 'output window, operand 0']
    #allocation4 [shape = 's32[2]{0}', space=sflag, size = 0x8, scoped, tag = 'scoped memory for tpu_custom_call.1']
    %12 = vsyncpa [#allocation4], 0
    %s13 = scalar_lea.sflag [#allocation4], 1
    %14 = vsyncpa %s13, 0
    loop: start=0, step=1, limit=4
    $region2: #{tpu_custom_call.1} parent=1 // loop_pre_header
      _
    $region3: #{tpu_custom_call.1} parent=1 // loop_header
      %s16 = sphi 0, %s20
      %p17 = scmp.ge.s32.totalorder %s16, 4
      %s23 = sphi 0, %s35
      %s24 = sphi 0, %s31
      %s25 = sphi 0, %s23
      %s26 = sphi 0, %s24
      %s27 = sphi 0, %s25
      %s28 = sphi 0, %s26
      %s40 = sphi 0, %s42
      %s43 = sphi 0, %s40
      %s44 = sphi 0, %s43
      %s60 = sphi 0, %s44
      %s66 = sphi 0, %s68
      %s69 = sphi 0, %s66
      %s70 = sphi 0, %s69
      %s86 = sphi 0, %s70
      %s92 = sphi 0, %s94
      %s95 = sphi 0, %s92
      %s96 = sphi 0, %s95
      %s112 = sphi 0, %s96
      %s116 = sphi 0, %s116
      %s118 = sphi 0, %s116
      %s119 = sphi 0, %s118
      %s133 = sphi 0, %s119
      %s137 = sphi 0, %s137
      %s139 = sphi 0, %s137
      %s140 = sphi 0, %s139
      %s154 = sphi 0, %s140
      %s158 = sphi 0, %s158
      %s160 = sphi 0, %s158
      %s161 = sphi 0, %s160
      %s175 = sphi 0, %s161
      %s179 = sphi 0, %s179
      %s181 = sphi 0, %s179
      %s182 = sphi 0, %s181
      %s196 = sphi 0, %s182
      %s204 = sphi 0, %s206
      %s207 = sphi 0, %s204
      %s208 = sphi 0, %s207
      %s224 = sphi 0, %s208
    $region4: #{tpu_custom_call.1} parent=1 // loop_header_branch
      %19 = sbr.rel (%p17) target = $region8
    $region5: #{tpu_custom_call.1} parent=1 // loop_body
      %s21 = ssub.s32 %s16, 1
      %s22 = ssub.s32 %s16, 2
      %s29 = sadd.s32 1, %s24
      %p30 = scmp.ge.s32.totalorder %s29, 1
      %s31 = scalar_select %p30, 0, %s29
      %s32 = sadd.s32 1, %s23
      %s33 = scalar_select %p30, %s32, %s23
      %p34 = scmp.ge.s32.totalorder %s33, 2
      %s35 = scalar_select %p34, 0, %s33
      %s36 = ssub.s32 %s23, %s35
      %s37 = ssub.s32 %s24, %s31
      %s38 = sor.u32 %s36, %s37
      %p39 = scmp.eq.s32.totalorder %s38, 0
      %s41 = sadd.s32 %s40, 1
      %s42 = scalar_select %p39, %s40, %s41
      %p45 = pneg %p39
      %p46 = scmp.eq.s32.totalorder %s16, 1
      %p47 = por %p45, %p46
      %p48 = scmp.ne.s32.totalorder %s40, %s43
      %p49 = scmp.eq.s32.totalorder %s16, 0
      %p50 = por %p48, %p49
      %p51 = scmp.ne.s32.totalorder %s40, %s43
      %p52 = scmp.eq.s32.totalorder %s21, 1
      %p53 = por %p51, %p52
      %p54 = scmp.ne.s32.totalorder %s43, %s44
      %p55 = scmp.eq.s32.totalorder %s21, 0
      %p56 = por %p54, %p55
      %p57 = scmp.ne.s32.totalorder %s43, %s44
      %p58 = scmp.eq.s32.totalorder %s22, 1
      %p59 = por %p57, %p58
      %p61 = scmp.ne.s32.totalorder %s44, %s60
      %p62 = scmp.eq.s32.totalorder %s22, 0
      %p63 = por %p61, %p62
      %s64 = ssub.s32 %s23, %s35
      %p65 = scmp.eq.s32.totalorder %s64, 0
      %s67 = sadd.s32 %s66, 1
      %s68 = scalar_select %p65, %s66, %s67
      %p71 = pneg %p65
      %p72 = scmp.eq.s32.totalorder %s16, 1
      %p73 = por %p71, %p72
      %p74 = scmp.ne.s32.totalorder %s66, %s69
      %p75 = scmp.eq.s32.totalorder %s16, 0
      %p76 = por %p74, %p75
      %p77 = scmp.ne.s32.totalorder %s66, %s69
      %p78 = scmp.eq.s32.totalorder %s21, 1
      %p79 = por %p77, %p78
      %p80 = scmp.ne.s32.totalorder %s69, %s70
      %p81 = scmp.eq.s32.totalorder %s21, 0
      %p82 = por %p80, %p81
      %p83 = scmp.ne.s32.totalorder %s69, %s70
      %p84 = scmp.eq.s32.totalorder %s22, 1
      %p85 = por %p83, %p84
      %p87 = scmp.ne.s32.totalorder %s70, %s86
      %p88 = scmp.eq.s32.totalorder %s22, 0
      %p89 = por %p87, %p88
      %s90 = ssub.s32 %s23, %s35
      %p91 = scmp.eq.s32.totalorder %s90, 0
      %s93 = sadd.s32 %s92, 1
      %s94 = scalar_select %p91, %s92, %s93
      %p97 = pneg %p91
      %p98 = scmp.eq.s32.totalorder %s16, 1
      %p99 = por %p97, %p98
      %p100 = scmp.ne.s32.totalorder %s92, %s95
      %p101 = scmp.eq.s32.totalorder %s16, 0
      %p102 = por %p100, %p101
      %p103 = scmp.ne.s32.totalorder %s92, %s95
      %p104 = scmp.eq.s32.totalorder %s21, 1
      %p105 = por %p103, %p104
      %p106 = scmp.ne.s32.totalorder %s95, %s96
      %p107 = scmp.eq.s32.totalorder %s21, 0
      %p108 = por %p106, %p107
      %p109 = scmp.ne.s32.totalorder %s95, %s96
      %p110 = scmp.eq.s32.totalorder %s22, 1
      %p111 = por %p109, %p110
      %p113 = scmp.ne.s32.totalorder %s96, %s112
      %p114 = scmp.eq.s32.totalorder %s22, 0
      %p115 = por %p113, %p114
      %s117 = sadd.s32 %s116, 1
      %p120 = scmp.eq.s32.totalorder %s16, 1
      %p121 = scmp.ne.s32.totalorder %s116, %s118
      %p122 = scmp.eq.s32.totalorder %s16, 0
      %p123 = por %p121, %p122
      %p124 = scmp.ne.s32.totalorder %s116, %s118
      %p125 = scmp.eq.s32.totalorder %s21, 1
      %p126 = por %p124, %p125
      %p127 = scmp.ne.s32.totalorder %s118, %s119
      %p128 = scmp.eq.s32.totalorder %s21, 0
      %p129 = por %p127, %p128
      %p130 = scmp.ne.s32.totalorder %s118, %s119
      %p131 = scmp.eq.s32.totalorder %s22, 1
      %p132 = por %p130, %p131
      %p134 = scmp.ne.s32.totalorder %s119, %s133
      %p135 = scmp.eq.s32.totalorder %s22, 0
      %p136 = por %p134, %p135
      %s138 = sadd.s32 %s137, 1
      %p141 = scmp.eq.s32.totalorder %s16, 1
      %p142 = scmp.ne.s32.totalorder %s137, %s139
      %p143 = scmp.eq.s32.totalorder %s16, 0
      %p144 = por %p142, %p143
      %p145 = scmp.ne.s32.totalorder %s137, %s139
      %p146 = scmp.eq.s32.totalorder %s21, 1
      %p147 = por %p145, %p146
      %p148 = scmp.ne.s32.totalorder %s139, %s140
      %p149 = scmp.eq.s32.totalorder %s21, 0
      %p150 = por %p148, %p149
      %p151 = scmp.ne.s32.totalorder %s139, %s140
      %p152 = scmp.eq.s32.totalorder %s22, 1
      %p153 = por %p151, %p152
      %p155 = scmp.ne.s32.totalorder %s140, %s154
      %p156 = scmp.eq.s32.totalorder %s22, 0
      %p157 = por %p155, %p156
      %s159 = sadd.s32 %s158, 1
      %p162 = scmp.eq.s32.totalorder %s16, 1
      %p163 = scmp.ne.s32.totalorder %s158, %s160
      %p164 = scmp.eq.s32.totalorder %s16, 0
      %p165 = por %p163, %p164
      %p166 = scmp.ne.s32.totalorder %s158, %s160
      %p167 = scmp.eq.s32.totalorder %s21, 1
      %p168 = por %p166, %p167
      %p169 = scmp.ne.s32.totalorder %s160, %s161
      %p170 = scmp.eq.s32.totalorder %s21, 0
      %p171 = por %p169, %p170
      %p172 = scmp.ne.s32.totalorder %s160, %s161
      %p173 = scmp.eq.s32.totalorder %s22, 1
      %p174 = por %p172, %p173
      %p176 = scmp.ne.s32.totalorder %s161, %s175
      %p177 = scmp.eq.s32.totalorder %s22, 0
      %p178 = por %p176, %p177
      %s180 = sadd.s32 %s179, 1
      %p183 = scmp.eq.s32.totalorder %s16, 1
      %p184 = scmp.ne.s32.totalorder %s179, %s181
      %p185 = scmp.eq.s32.totalorder %s16, 0
      %p186 = por %p184, %p185
      %p187 = scmp.ne.s32.totalorder %s179, %s181
      %p188 = scmp.eq.s32.totalorder %s21, 1
      %p189 = por %p187, %p188
      %p190 = scmp.ne.s32.totalorder %s181, %s182
      %p191 = scmp.eq.s32.totalorder %s21, 0
      %p192 = por %p190, %p191
      %p193 = scmp.ne.s32.totalorder %s181, %s182
      %p194 = scmp.eq.s32.totalorder %s22, 1
      %p195 = por %p193, %p194
      %p197 = scmp.ne.s32.totalorder %s182, %s196
      %p198 = scmp.eq.s32.totalorder %s22, 0
      %p199 = por %p197, %p198
      %s200 = ssub.s32 %s23, %s35
      %s201 = ssub.s32 %s24, %s31
      %s202 = sor.u32 %s200, %s201
      %p203 = scmp.eq.s32.totalorder %s202, 0
      %s205 = sadd.s32 %s204, 1
      %s206 = scalar_select %p203, %s204, %s205
      %p209 = pneg %p203
      %p210 = scmp.eq.s32.totalorder %s16, 1
      %p211 = por %p209, %p210
      %p212 = scmp.ne.s32.totalorder %s204, %s207
      %p213 = scmp.eq.s32.totalorder %s16, 0
      %p214 = por %p212, %p213
      %p215 = scmp.ne.s32.totalorder %s204, %s207
      %p216 = scmp.eq.s32.totalorder %s21, 1
      %p217 = por %p215, %p216
      %p218 = scmp.ne.s32.totalorder %s207, %s208
      %p219 = scmp.eq.s32.totalorder %s21, 0
      %p220 = por %p218, %p219
      %p221 = scmp.ne.s32.totalorder %s207, %s208
      %p222 = scmp.eq.s32.totalorder %s22, 1
      %p223 = por %p221, %p222
      %p225 = scmp.ne.s32.totalorder %s208, %s224
      %p226 = scmp.eq.s32.totalorder %s22, 0
      %p227 = por %p225, %p226
      %p228 = scmp.le.s32.totalorder 1, %s16
      %p229 = scmp.lt.s32.totalorder %s16, 3
      %p230 = pnand %p228, %p229
      %p231 = pneg %p230
      // Predicated region
      $region9: #{tpu_custom_call.1} parent=5 // pred_check
        _
      $region10: #{tpu_custom_call.1} parent=5 // pred_check_branch
        %233 = sbr.rel (%p230) target = $region12
      $region11: #{tpu_custom_call.1} parent=5 // pred_region
        %s234 = ssub.s32 %s16, 1
        // Predicated region
        $region13: #{tpu_custom_call.1} parent=11 // pred_check
          %p235 = pneg %p129
        $region14: #{tpu_custom_call.1} parent=11 // pred_check_branch
          %237 = sbr.rel (%p235) target = $region16
        $region15: #{tpu_custom_call.1} parent=11 // pred_region
          _
        $region16: #{tpu_custom_call.1} parent=11 // pred_fallthru
          _
        // Predicated region
        $region17: #{tpu_custom_call.1} parent=11 // pred_check
          %p238 = pneg %p150
        $region18: #{tpu_custom_call.1} parent=11 // pred_check_branch
          %240 = sbr.rel (%p238) target = $region20
        $region19: #{tpu_custom_call.1} parent=11 // pred_region
          _
        $region20: #{tpu_custom_call.1} parent=11 // pred_fallthru
          _
        // Predicated region
        $region21: #{tpu_custom_call.1} parent=11 // pred_check
          %p241 = pneg %p171
        $region22: #{tpu_custom_call.1} parent=11 // pred_check_branch
          %243 = sbr.rel (%p241) target = $region24
        $region23: #{tpu_custom_call.1} parent=11 // pred_region
          _
        $region24: #{tpu_custom_call.1} parent=11 // pred_fallthru
          _
        // Predicated region
        $region25: #{tpu_custom_call.1} parent=11 // pred_check
          %p244 = pneg %p192
        $region26: #{tpu_custom_call.1} parent=11 // pred_check_branch
          %246 = sbr.rel (%p244) target = $region28
        $region27: #{tpu_custom_call.1} parent=11 // pred_region
          _
        $region28: #{tpu_custom_call.1} parent=11 // pred_fallthru
          _
      $region12: #{tpu_custom_call.1} parent=5 // pred_fallthru
        _
      %p247 = scmp.lt.s32.totalorder %s16, 2
      // Predicated region
      $region29: #{tpu_custom_call.1} parent=5 // pred_check
        %p248 = pneg %p247
      $region30: #{tpu_custom_call.1} parent=5 // pred_check_branch
        %250 = sbr.rel (%p248) target = $region32
      $region31: #{tpu_custom_call.1} parent=5 // pred_region
        // Predicated region
        $region33: #{tpu_custom_call.1} parent=31 // pred_check
          %p251 = pneg %p50
        $region34: #{tpu_custom_call.1} parent=31 // pred_check_branch
          %253 = sbr.rel (%p251) target = $region36
        $region35: #{tpu_custom_call.1} parent=31 // pred_region
          %s254 = smul.u32 2, %s24
          %p255 = scmp.lt.s32.totalorder %s23, 1
          %s256 = scalar_select %p255, %s23, 1
          %p257 = scmp.lt.s32.totalorder %s254, 1
          %s258 = scalar_select %p257, %s254, 1
          %s259 = smul.addr %s256, 2
          %s260 = sadd.s32 %s258, %s259
          %s261 = smul.addr %s260, 8
          %s262 = scalar_lea.vmem %s0, %s261
          %s263 = smul.u32 2, %s24
        $region36: #{tpu_custom_call.1} parent=31 // pred_fallthru
          _
        // Predicated region
        $region37: #{tpu_custom_call.1} parent=31 // pred_check
          %p264 = pneg %p76
        $region38: #{tpu_custom_call.1} parent=31 // pred_check_branch
          %266 = sbr.rel (%p264) target = $region40
        $region39: #{tpu_custom_call.1} parent=31 // pred_region
          %p267 = scmp.lt.s32.totalorder %s23, 1
          %s268 = scalar_select %p267, %s23, 1
          %s269 = smul.addr %s268, 64
          %s270 = smul.addr %s269, 8
          %s271 = scalar_lea.vmem %s1, %s270
        $region40: #{tpu_custom_call.1} parent=31 // pred_fallthru
          _
        // Predicated region
        $region41: #{tpu_custom_call.1} parent=31 // pred_check
          %p272 = pneg %p102
        $region42: #{tpu_custom_call.1} parent=31 // pred_check_branch
          %274 = sbr.rel (%p272) target = $region44
        $region43: #{tpu_custom_call.1} parent=31 // pred_region
          %p275 = scmp.lt.s32.totalorder %s23, 1
          %s276 = scalar_select %p275, %s23, 1
          %s277 = smul.addr %s276, 64
          %s278 = smul.addr %s277, 8
          %s279 = scalar_lea.vmem %s2, %s278
        $region44: #{tpu_custom_call.1} parent=31 // pred_fallthru
          _
      $region32: #{tpu_custom_call.1} parent=5 // pred_fallthru
        _
      %p280 = scmp.le.s32.totalorder 1, %s16
      %p281 = scmp.lt.s32.totalorder %s16, 3
      %p282 = pnand %p280, %p281
      %p283 = pneg %p282
      // Predicated region
      $region45: #{tpu_custom_call.1} parent=5 // pred_check
        _
      $region46: #{tpu_custom_call.1} parent=5 // pred_check_branch
        %285 = sbr.rel (%p282) target = $region48
      $region47: #{tpu_custom_call.1} parent=5 // pred_region
        %s286 = ssub.s32 %s16, 1
        %s287 = smul.u32 2, %s26
        %p288 = scmp.lt.s32.totalorder %s25, 1
        %s289 = scalar_select %p288, %s25, 1
        %p290 = scmp.lt.s32.totalorder %s287, 1
        %s291 = scalar_select %p290, %s287, 1
        %s292 = smul.addr %s289, 2
        %s293 = sadd.s32 %s291, %s292
        %s294 = smul.addr %s293, 8
        %s295 = scalar_lea.vmem %s0, %s294
        %p296 = pneg %p56
        %p297 = pneg %p53
        %p298 = scmp.lt.s32.totalorder %s25, 1
        %s299 = scalar_select %p298, %s25, 1
        %s300 = smul.addr %s299, 64
        %s301 = smul.addr %s300, 8
        %s302 = scalar_lea.vmem %s1, %s301
        %p303 = pneg %p82
        %p304 = pneg %p79
        %p305 = scmp.lt.s32.totalorder %s25, 1
        %s306 = scalar_select %p305, %s25, 1
        %s307 = smul.addr %s306, 64
        %s308 = smul.addr %s307, 8
        %s309 = scalar_lea.vmem %s2, %s308
        %p310 = pneg %p108
        %p311 = pneg %p105
        %p312 = pneg %p129
        %p313 = pneg %p126
        %p314 = pneg %p150
        %p315 = pneg %p147
        %p316 = pneg %p171
        %p317 = pneg %p168
        %p318 = pneg %p192
        %p319 = pneg %p189
        %p320 = pneg %p220
        %p321 = pneg %p217
        %s322 = sand.u32 %s207, 1
        %s323 = scalar_lea.sflag [#allocation4], %s322
        %s324 = sand.u32 %s207, 1
        %s325 = smul.addr %s324, 16
        %s326 = scalar_lea.vmem [#allocation3], %s325
        %s327 = smul.u32 2, %s26
        %p328 = scmp.lt.s32.totalorder %s25, 1
        %s329 = scalar_select %p328, %s25, 1
        %p330 = scmp.lt.s32.totalorder %s327, 1
        %s331 = scalar_select %p330, %s327, 1
        %s332 = smul.addr %s329, 2
        %s333 = sadd.s32 %s331, %s332
        %s334 = smul.addr %s333, 8
        %s335 = scalar_lea.vmem %s0, %s334
        %s336 = smul.u32 2, %s26
        %p337 = scmp.lt.s32.totalorder %s25, 1
        %s338 = scalar_select %p337, %s25, 1
        %s339 = smul.addr %s338, 64
        %s340 = smul.addr %s339, 8
        %s341 = scalar_lea.vmem %s1, %s340
        %p342 = scmp.lt.s32.totalorder %s25, 1
        %s343 = scalar_select %p342, %s25, 1
        %s344 = smul.addr %s343, 64
        %s345 = smul.addr %s344, 8
        %s346 = scalar_lea.vmem %s2, %s345
        %s347 = smul.u32 2, %s26
        %v348 = vld [vmem:[%s335] sm:$0xff]
        %v349 = vld [vmem:[%s335 + $0x8] sm:$0xff]
        %v350 = vlaneseq
        %v351 = vand.u32 %v350, 127
        %vm352 = vcmp.lt.s32.totalorder %v351, 8
        %v353 = vsel %vm352, 0.0, -1e+30
        %v354 = vld [vmem:[%s3] sm:$0xff]
        %v355 = vld [vmem:[%s3 + $0x8] sm:$0xff]
        %v356 = vld [vmem:[%s3 + $0x10] sm:$0xff]
        %v357 = vld [vmem:[%s3 + $0x18] sm:$0xff]
        %v358 = vld [vmem:[%s4] sm:$0x1]
        %v360 = vlaneseq
        %v361 = vshrl.u32 %v360, 7
        %v362 = vsub.s32 0, %v361
        %v363 = vrot.slane %v358, %v362
        %vm365 = vcmask 261120
        %v367 = vsel %vm365, %v348, 0
        %v370 = vsel %vm365, %v349, 0
        %372 = vmatprep.subr.mxu0 0.0
        %373 = vmatpush1.msra.mxu0 %v354
        %374 = vmatprep.subr.mxu0 0.0
        %375 = vmatpush1.msra.mxu0 %v355
        %376 = vmatprep.subr.mxu0 0.0
        %377 = vmatpush1.msra.mxu0 %v356
        %378 = vmatprep.subr.mxu0 0.0
        %379 = vmatpush1.msra.mxu0 %v357
        %380 = vmatprep.subr.mxu0 0.0
        %381 = vmatpush1.msra.mxu0 0.0
        %382 = vmatprep.subr.mxu0 0.0
        %383 = vmatpush1.msra.mxu0 0.0
        %384 = vmatprep.subr.mxu0 0.0
        %385 = vmatpush1.msra.mxu0 0.0
        %386 = vmatprep.subr.mxu0 0.0
        %387 = vmatpush1.msra.mxu0 0.0
        %388 = vmatprep.subr.mxu0 0.0
        %389 = vmatpush1.msra.mxu0 0.0
        %390 = vmatprep.subr.mxu0 0.0
        %391 = vmatpush1.msra.mxu0 0.0
        %392 = vmatprep.subr.mxu0 0.0
        %393 = vmatpush1.msra.mxu0 0.0
        %394 = vmatprep.subr.mxu0 0.0
        %395 = vmatpush1.msra.mxu0 0.0
        %396 = vmatprep.subr.mxu0 0.0
        %397 = vmatpush1.msra.mxu0 0.0
        %398 = vmatprep.subr.mxu0 0.0
        %399 = vmatpush1.msra.mxu0 0.0
        %400 = vmatprep.subr.mxu0 0.0
        %401 = vmatpush1.msra.mxu0 0.0
        %402 = vmatprep.subr.mxu0 0.0
        %403 = vmatpush1.msra.mxu0 0.0
        %404 = vmatprep.subr.mxu0 0.0
        %405 = vmatpush1.msra.mxu0 0.0
        %406 = vmatprep.subr.mxu0 0.0
        %407 = vmatpush1.msra.mxu0 0.0
        %408 = vmatprep.subr.mxu0 0.0
        %409 = vmatpush1.msra.mxu0 0.0
        %410 = vmatprep.subr.mxu0 0.0
        %411 = vmatpush1.msra.mxu0 0.0
        %412 = vmatprep.subr.mxu0 0.0
        %413 = vmatpush1.msra.mxu0 0.0
        %414 = vmatprep.subr.mxu0 0.0
        %415 = vmatpush1.msra.mxu0 0.0
        %416 = vmatprep.subr.mxu0 0.0
        %417 = vmatpush1.msra.mxu0 0.0
        %418 = vmatprep.subr.mxu0 0.0
        %419 = vmatpush1.msra.mxu0 0.0
        %420 = vmatprep.subr.mxu0 0.0
        %421 = vmatpush1.msra.mxu0 0.0
        %422 = vmatprep.subr.mxu0 0.0
        %423 = vmatpush1.msra.mxu0 0.0
        %424 = vmatprep.subr.mxu0 0.0
        %425 = vmatpush1.msra.mxu0 0.0
        %426 = vmatprep.subr.mxu0 0.0
        %427 = vmatpush1.msra.mxu0 0.0
        %428 = vmatprep.subr.mxu0 0.0
        %429 = vmatpush1.msra.mxu0 0.0
        %430 = vmatprep.subr.mxu0 0.0
        %431 = vmatpush1.msra.mxu0 0.0
        %432 = vmatprep.subr.mxu0 0.0
        %433 = vmatpush1.msra.mxu0 0.0
        %434 = vmatprep.subr.mxu0 0.0
        %435 = vmatpush1.msra.mxu0 0.0
        %436 = vmatprep.mubr.f32.mxu0 0.0
        %437 = vmatmul.mubr.f32.gmra.mrb[0].mxu0 %v367
        %v438 = vpop.f32.mrb[0].mxu0
        %v439 = vadd.f32 %v363, %v438
        %v440 = vpop.f32.mrb[0].mxu0
        %441 = vmatprep.mubr.f32.mxu0 0.0
        %442 = vmatmul.mubr.f32.gmra.mrb[0].mxu0 %v370
        %v443 = vpop.f32.mrb[0].mxu0
        %v444 = vadd.f32 %v363, %v443
        %v445 = vpop.f32.mrb[0].mxu0
        %446 = vdwg.mxu0
        %v447 = vld [vmem:[%s341] sm:$0xff]
        %v448 = vld [vmem:[%s341 + $0x8] sm:$0xff]
        %v449 = vld [vmem:[%s341 + $0x10] sm:$0xff]
        %v450 = vld [vmem:[%s341 + $0x18] sm:$0xff]
        %v451 = vld [vmem:[%s341 + $0x20] sm:$0xff]
        %v452 = vld [vmem:[%s341 + $0x28] sm:$0xff]
        %v453 = vld [vmem:[%s341 + $0x30] sm:$0xff]
        %v454 = vld [vmem:[%s341 + $0x38] sm:$0xff]
        %v455 = vld [vmem:[%s341 + $0x40] sm:$0xff]
        %v456 = vld [vmem:[%s341 + $0x48] sm:$0xff]
        %v457 = vld [vmem:[%s341 + $0x50] sm:$0xff]
        %v458 = vld [vmem:[%s341 + $0x58] sm:$0xff]
        %v459 = vld [vmem:[%s341 + $0x60] sm:$0xff]
        %v460 = vld [vmem:[%s341 + $0x68] sm:$0xff]
        %v461 = vld [vmem:[%s341 + $0x70] sm:$0xff]
        %v462 = vld [vmem:[%s341 + $0x78] sm:$0xff]
        %v463 = vld [vmem:[%s346] sm:$0xff]
        %v464 = vld [vmem:[%s346 + $0x8] sm:$0xff]
        %v465 = vld [vmem:[%s346 + $0x10] sm:$0xff]
        %v466 = vld [vmem:[%s346 + $0x18] sm:$0xff]
        %v467 = vld [vmem:[%s346 + $0x20] sm:$0xff]
        %v468 = vld [vmem:[%s346 + $0x28] sm:$0xff]
        %v469 = vld [vmem:[%s346 + $0x30] sm:$0xff]
        %v470 = vld [vmem:[%s346 + $0x38] sm:$0xff]
        %v471 = vld [vmem:[%s346 + $0x40] sm:$0xff]
        %v472 = vld [vmem:[%s346 + $0x48] sm:$0xff]
        %v473 = vld [vmem:[%s346 + $0x50] sm:$0xff]
        %v474 = vld [vmem:[%s346 + $0x58] sm:$0xff]
        %v475 = vld [vmem:[%s346 + $0x60] sm:$0xff]
        %v476 = vld [vmem:[%s346 + $0x68] sm:$0xff]
        %v477 = vld [vmem:[%s346 + $0x70] sm:$0xff]
        %v478 = vld [vmem:[%s346 + $0x78] sm:$0xff]
        %vm479 = vcmask 64512
        %v481 = vsel %vm479, %v439, 0
        %v484 = vsel %vm479, %v444, 0
        %v487 = vsel %vm479, %v447, 0
        %v490 = vsel %vm479, %v448, 0
        %v493 = vsel %vm479, %v449, 0
        %v496 = vsel %vm479, %v450, 0
        %v499 = vsel %vm479, %v451, 0
        %v502 = vsel %vm479, %v452, 0
        %v505 = vsel %vm479, %v453, 0
        %v508 = vsel %vm479, %v454, 0
        %v511 = vsel %vm479, %v455, 0
        %v514 = vsel %vm479, %v456, 0
        %v517 = vsel %vm479, %v457, 0
        %v520 = vsel %vm479, %v458, 0
        %v523 = vsel %vm479, %v459, 0
        %v526 = vsel %vm479, %v460, 0
        %v529 = vsel %vm479, %v461, 0
        %v532 = vsel %vm479, %v462, 0
        %534 = vmatprep.subr.mxu0 0.0
        %535 = vmatpush1.xpose.msra.mxu0 %v487
        %536 = vmatprep.subr.mxu0 0.0
        %537 = vmatpush1.xpose.msra.mxu0 %v490
        %538 = vmatprep.subr.mxu0 0.0
        %539 = vmatpush1.xpose.msra.mxu0 %v493
        %540 = vmatprep.subr.mxu0 0.0
        %541 = vmatpush1.xpose.msra.mxu0 %v496
        %542 = vmatprep.subr.mxu0 0.0
        %543 = vmatpush1.xpose.msra.mxu0 %v499
        %544 = vmatprep.subr.mxu0 0.0
        %545 = vmatpush1.xpose.msra.mxu0 %v502
        %546 = vmatprep.subr.mxu0 0.0
        %547 = vmatpush1.xpose.msra.mxu0 %v505
        %548 = vmatprep.subr.mxu0 0.0
        %549 = vmatpush1.xpose.msra.mxu0 %v508
        %550 = vmatprep.subr.mxu0 0.0
        %551 = vmatpush1.xpose.msra.mxu0 %v511
        %552 = vmatprep.subr.mxu0 0.0
        %553 = vmatpush1.xpose.msra.mxu0 %v514
        %554 = vmatprep.subr.mxu0 0.0
        %555 = vmatpush1.xpose.msra.mxu0 %v517
        %556 = vmatprep.subr.mxu0 0.0
        %557 = vmatpush1.xpose.msra.mxu0 %v520
        %558 = vmatprep.subr.mxu0 0.0
        %559 = vmatpush1.xpose.msra.mxu0 %v523
        %560 = vmatprep.subr.mxu0 0.0
        %561 = vmatpush1.xpose.msra.mxu0 %v526
        %562 = vmatprep.subr.mxu0 0.0
        %563 = vmatpush1.xpose.msra.mxu0 %v529
        %564 = vmatprep.subr.mxu0 0.0
        %565 = vmatpush1.xpose.msra.mxu0 %v532
        %566 = vmatprep.subr.mxu0 0.0
        %567 = vmatpush1.xpose.msra.mxu0 0.0
        %568 = vmatprep.subr.mxu0 0.0
        %569 = vmatpush1.xpose.msra.mxu0 0.0
        %570 = vmatprep.subr.mxu0 0.0
        %571 = vmatpush1.xpose.msra.mxu0 0.0
        %572 = vmatprep.subr.mxu0 0.0
        %573 = vmatpush1.xpose.msra.mxu0 0.0
        %574 = vmatprep.subr.mxu0 0.0
        %575 = vmatpush1.xpose.msra.mxu0 0.0
        %576 = vmatprep.subr.mxu0 0.0
        %577 = vmatpush1.xpose.msra.mxu0 0.0
        %578 = vmatprep.subr.mxu0 0.0
        %579 = vmatpush1.xpose.msra.mxu0 0.0
        %580 = vmatprep.subr.mxu0 0.0
        %581 = vmatpush1.xpose.msra.mxu0 0.0
        %582 = vmatprep.subr.mxu0 0.0
        %583 = vmatpush1.xpose.msra.mxu0 0.0
        %584 = vmatprep.subr.mxu0 0.0
        %585 = vmatpush1.xpose.msra.mxu0 0.0
        %586 = vmatprep.subr.mxu0 0.0
        %587 = vmatpush1.xpose.msra.mxu0 0.0
        %588 = vmatprep.subr.mxu0 0.0
        %589 = vmatpush1.xpose.msra.mxu0 0.0
        %590 = vmatprep.subr.mxu0 0.0
        %591 = vmatpush1.xpose.msra.mxu0 0.0
        %592 = vmatprep.subr.mxu0 0.0
        %593 = vmatpush1.xpose.msra.mxu0 0.0
        %594 = vmatprep.subr.mxu0 0.0
        %595 = vmatpush1.xpose.msra.mxu0 0.0
        %596 = vmatprep.subr.mxu0 0.0
        %597 = vmatpush1.xpose.msra.mxu0 0.0
        %598 = vmatprep.mubr.f32.mxu0 0.0
        %599 = vmatmul.mubr.f32.gmra.mrb[0].mxu0 %v481
        %v600 = vpop.f32.mrb[0].mxu0
        %v601 = vadd.f32 %v353, %v600
        %v602 = vpop.f32.mrb[0].mxu0
        %603 = vmatprep.mubr.f32.mxu0 0.0
        %604 = vmatmul.mubr.f32.gmra.mrb[0].mxu0 %v484
        %v605 = vpop.f32.mrb[0].mxu0
        %v606 = vadd.f32 %v353, %v605
        %v607 = vpop.f32.mrb[0].mxu0
        %608 = vdwg.mxu0
        %609 = vmax.xlane.f32.xlu0 %v601
        %v610 = vpop.xlane.xlu0 %609
        %611 = vmax.xlane.f32.xlu0 %v606
        %v612 = vpop.xlane.xlu0 %611
        %v613 = vsub.f32 %v601, %v610
        %v614 = vsub.f32 %v606, %v612
        %v615 = vmul.f32 %v613, 1.442695
        %v616 = vpow.pop %v615
        %v617 = vmul.f32 %v614, 1.442695
        %v618 = vpow.pop %v617
        %619 = vadd.xlane.f32.xlu0 %v616
        %v620 = vpop.xlane.xlu0 %619
        %621 = vadd.xlane.f32.xlu0 %v618
        %v622 = vpop.xlane.xlu0 %621
        %v623 = vrcp.pop %v620
        %v624 = vrcp.pop %v622
        %v625 = vmul.f32 %v616, %v623
        %v626 = vmul.f32 %v618, %v624
        %627 = vmatprep.subr.mxu0 0.0
        %628 = vmatpush1.msra.mxu0 %v463
        %629 = vmatprep.subr.mxu0 0.0
        %630 = vmatpush1.msra.mxu0 %v464
        %631 = vmatprep.subr.mxu0 0.0
        %632 = vmatpush1.msra.mxu0 %v465
        %633 = vmatprep.subr.mxu0 0.0
        %634 = vmatpush1.msra.mxu0 %v466
        %635 = vmatprep.subr.mxu0 0.0
        %636 = vmatpush1.msra.mxu0 %v467
        %637 = vmatprep.subr.mxu0 0.0
        %638 = vmatpush1.msra.mxu0 %v468
        %639 = vmatprep.subr.mxu0 0.0
        %640 = vmatpush1.msra.mxu0 %v469
        %641 = vmatprep.subr.mxu0 0.0
        %642 = vmatpush1.msra.mxu0 %v470
        %643 = vmatprep.subr.mxu0 0.0
        %644 = vmatpush1.msra.mxu0 %v471
        %645 = vmatprep.subr.mxu0 0.0
        %646 = vmatpush1.msra.mxu0 %v472
        %647 = vmatprep.subr.mxu0 0.0
        %648 = vmatpush1.msra.mxu0 %v473
        %649 = vmatprep.subr.mxu0 0.0
        %650 = vmatpush1.msra.mxu0 %v474
        %651 = vmatprep.subr.mxu0 0.0
        %652 = vmatpush1.msra.mxu0 %v475
        %653 = vmatprep.subr.mxu0 0.0
        %654 = vmatpush1.msra.mxu0 %v476
        %655 = vmatprep.subr.mxu0 0.0
        %656 = vmatpush1.msra.mxu0 %v477
        %657 = vmatprep.subr.mxu0 0.0
        %658 = vmatpush1.msra.mxu0 %v478
        %659 = vmatprep.subr.mxu0 0.0
        %660 = vmatpush1.msra.mxu0 0.0
        %661 = vmatprep.subr.mxu0 0.0
        %662 = vmatpush1.msra.mxu0 0.0
        %663 = vmatprep.subr.mxu0 0.0
        %664 = vmatpush1.msra.mxu0 0.0
        %665 = vmatprep.subr.mxu0 0.0
        %666 = vmatpush1.msra.mxu0 0.0
        %667 = vmatprep.subr.mxu0 0.0
        %668 = vmatpush1.msra.mxu0 0.0
        %669 = vmatprep.subr.mxu0 0.0
        %670 = vmatpush1.msra.mxu0 0.0
        %671 = vmatprep.subr.mxu0 0.0
        %672 = vmatpush1.msra.mxu0 0.0
        %673 = vmatprep.subr.mxu0 0.0
        %674 = vmatpush1.msra.mxu0 0.0
        %675 = vmatprep.subr.mxu0 0.0
        %676 = vmatpush1.msra.mxu0 0.0
        %677 = vmatprep.subr.mxu0 0.0
        %678 = vmatpush1.msra.mxu0 0.0
        %679 = vmatprep.subr.mxu0 0.0
        %680 = vmatpush1.msra.mxu0 0.0
        %681 = vmatprep.subr.mxu0 0.0
        %682 = vmatpush1.msra.mxu0 0.0
        %683 = vmatprep.subr.mxu0 0.0
        %684 = vmatpush1.msra.mxu0 0.0
        %685 = vmatprep.subr.mxu0 0.0
        %686 = vmatpush1.msra.mxu0 0.0
        %687 = vmatprep.subr.mxu0 0.0
        %688 = vmatpush1.msra.mxu0 0.0
        %689 = vmatprep.subr.mxu0 0.0
        %690 = vmatpush1.msra.mxu0 0.0
        %691 = vmatprep.mubr.f32.mxu0 0.0
        %692 = vmatmul.mubr.f32.gmra.mrb[0].mxu0 %v625
        %v693 = vpop.f32.mrb[0].mxu0
        %v694 = vadd.f32 0.0, %v693
        %v695 = vpop.f32.mrb[0].mxu0
        %696 = vmatprep.mubr.f32.mxu0 0.0
        %697 = vmatmul.mubr.f32.gmra.mrb[0].mxu0 %v626
        %v698 = vpop.f32.mrb[0].mxu0
        %v699 = vadd.f32 0.0, %v698
        %v700 = vpop.f32.mrb[0].mxu0
        %701 = vdwg.mxu0
        %v702 = vld [vmem:[%s5] sm:$0xff]
        %v704 = vsel %vm479, %v694, 0
        %v707 = vsel %vm479, %v699, 0
        %709 = vmatprep.subr.mxu0 0.0
        %710 = vmatpush1.msra.mxu0 %v702
        %711 = vmatprep.subr.mxu0 0.0
        %712 = vmatpush1.msra.mxu0 0.0
        %713 = vmatprep.subr.mxu0 0.0
        %714 = vmatpush1.msra.mxu0 0.0
        %715 = vmatprep.subr.mxu0 0.0
        %716 = vmatpush1.msra.mxu0 0.0
        %717 = vmatprep.subr.mxu0 0.0
        %718 = vmatpush1.msra.mxu0 0.0
        %719 = vmatprep.subr.mxu0 0.0
        %720 = vmatpush1.msra.mxu0 0.0
        %721 = vmatprep.subr.mxu0 0.0
        %722 = vmatpush1.msra.mxu0 0.0
        %723 = vmatprep.subr.mxu0 0.0
        %724 = vmatpush1.msra.mxu0 0.0
        %725 = vmatprep.subr.mxu0 0.0
        %726 = vmatpush1.msra.mxu0 0.0
        %727 = vmatprep.subr.mxu0 0.0
        %728 = vmatpush1.msra.mxu0 0.0
        %729 = vmatprep.subr.mxu0 0.0
        %730 = vmatpush1.msra.mxu0 0.0
        %731 = vmatprep.subr.mxu0 0.0
        %732 = vmatpush1.msra.mxu0 0.0
        %733 = vmatprep.subr.mxu0 0.0
        %734 = vmatpush1.msra.mxu0 0.0
        %735 = vmatprep.subr.mxu0 0.0
        %736 = vmatpush1.msra.mxu0 0.0
        %737 = vmatprep.subr.mxu0 0.0
        %738 = vmatpush1.msra.mxu0 0.0
        %739 = vmatprep.subr.mxu0 0.0
        %740 = vmatpush1.msra.mxu0 0.0
        %741 = vmatprep.subr.mxu0 0.0
        %742 = vmatpush1.msra.mxu0 0.0
        %743 = vmatprep.subr.mxu0 0.0
        %744 = vmatpush1.msra.mxu0 0.0
        %745 = vmatprep.subr.mxu0 0.0
        %746 = vmatpush1.msra.mxu0 0.0
        %747 = vmatprep.subr.mxu0 0.0
        %748 = vmatpush1.msra.mxu0 0.0
        %749 = vmatprep.subr.mxu0 0.0
        %750 = vmatpush1.msra.mxu0 0.0
        %751 = vmatprep.subr.mxu0 0.0
        %752 = vmatpush1.msra.mxu0 0.0
        %753 = vmatprep.subr.mxu0 0.0
        %754 = vmatpush1.msra.mxu0 0.0
        %755 = vmatprep.subr.mxu0 0.0
        %756 = vmatpush1.msra.mxu0 0.0
        %757 = vmatprep.subr.mxu0 0.0
        %758 = vmatpush1.msra.mxu0 0.0
        %759 = vmatprep.subr.mxu0 0.0
        %760 = vmatpush1.msra.mxu0 0.0
        %761 = vmatprep.subr.mxu0 0.0
        %762 = vmatpush1.msra.mxu0 0.0
        %763 = vmatprep.subr.mxu0 0.0
        %764 = vmatpush1.msra.mxu0 0.0
        %765 = vmatprep.subr.mxu0 0.0
        %766 = vmatpush1.msra.mxu0 0.0
        %767 = vmatprep.subr.mxu0 0.0
        %768 = vmatpush1.msra.mxu0 0.0
        %769 = vmatprep.subr.mxu0 0.0
        %770 = vmatpush1.msra.mxu0 0.0
        %771 = vmatprep.subr.mxu0 0.0
        %772 = vmatpush1.msra.mxu0 0.0
        %773 = vmatprep.mubr.f32.mxu0 0.0
        %774 = vmatmul.mubr.f32.gmra.mrb[0].mxu0 %v704
        %v775 = vpop.f32.mrb[0].mxu0
        %v776 = vadd.f32 0.0, %v775
        %v777 = vpop.f32.mrb[0].mxu0
        %778 = vmatprep.mubr.f32.mxu0 0.0
        %779 = vmatmul.mubr.f32.gmra.mrb[0].mxu0 %v707
        %v780 = vpop.f32.mrb[0].mxu0
        %v781 = vadd.f32 0.0, %v780
        %v782 = vpop.f32.mrb[0].mxu0
        %783 = vdwg.mxu0
        %784 = vst.msk [vmem:[#allocation2] sm:$0xff] %vm365, %v776
        %785 = vst.msk [vmem:[#allocation2 + $0x8] sm:$0xff] %vm365, %v781
        %s786 = scalar_lea.vmem %s3, 32
        %v787 = vld [vmem:[%s786] sm:$0xff]
        %v788 = vld [vmem:[%s786 + $0x8] sm:$0xff]
        %v789 = vld [vmem:[%s786 + $0x10] sm:$0xff]
        %v790 = vld [vmem:[%s786 + $0x18] sm:$0xff]
        %s791 = scalar_lea.vmem %s4, 1
        %v792 = vld [vmem:[%s791] sm:$0x1]
        %v794 = vlaneseq
        %v795 = vshrl.u32 %v794, 7
        %v796 = vsub.s32 0, %v795
        %v797 = vrot.slane %v792, %v796
        %799 = vmatprep.subr.mxu0 0.0
        %800 = vmatpush1.msra.mxu0 %v787
        %801 = vmatprep.subr.mxu0 0.0
        %802 = vmatpush1.msra.mxu0 %v788
        %803 = vmatprep.subr.mxu0 0.0
        %804 = vmatpush1.msra.mxu0 %v789
        %805 = vmatprep.subr.mxu0 0.0
        %806 = vmatpush1.msra.mxu0 %v790
        %807 = vmatprep.subr.mxu0 0.0
        %808 = vmatpush1.msra.mxu0 0.0
        %809 = vmatprep.subr.mxu0 0.0
        %810 = vmatpush1.msra.mxu0 0.0
        %811 = vmatprep.subr.mxu0 0.0
        %812 = vmatpush1.msra.mxu0 0.0
        %813 = vmatprep.subr.mxu0 0.0
        %814 = vmatpush1.msra.mxu0 0.0
        %815 = vmatprep.subr.mxu0 0.0
        %816 = vmatpush1.msra.mxu0 0.0
        %817 = vmatprep.subr.mxu0 0.0
        %818 = vmatpush1.msra.mxu0 0.0
        %819 = vmatprep.subr.mxu0 0.0
        %820 = vmatpush1.msra.mxu0 0.0
        %821 = vmatprep.subr.mxu0 0.0
        %822 = vmatpush1.msra.mxu0 0.0
        %823 = vmatprep.subr.mxu0 0.0
        %824 = vmatpush1.msra.mxu0 0.0
        %825 = vmatprep.subr.mxu0 0.0
        %826 = vmatpush1.msra.mxu0 0.0
        %827 = vmatprep.subr.mxu0 0.0
        %828 = vmatpush1.msra.mxu0 0.0
        %829 = vmatprep.subr.mxu0 0.0
        %830 = vmatpush1.msra.mxu0 0.0
        %831 = vmatprep.subr.mxu0 0.0
        %832 = vmatpush1.msra.mxu0 0.0
        %833 = vmatprep.subr.mxu0 0.0
        %834 = vmatpush1.msra.mxu0 0.0
        %835 = vmatprep.subr.mxu0 0.0
        %836 = vmatpush1.msra.mxu0 0.0
        %837 = vmatprep.subr.mxu0 0.0
        %838 = vmatpush1.msra.mxu0 0.0
        %839 = vmatprep.subr.mxu0 0.0
        %840 = vmatpush1.msra.mxu0 0.0
        %841 = vmatprep.subr.mxu0 0.0
        %842 = vmatpush1.msra.mxu0 0.0
        %843 = vmatprep.subr.mxu0 0.0
        %844 = vmatpush1.msra.mxu0 0.0
        %845 = vmatprep.subr.mxu0 0.0
        %846 = vmatpush1.msra.mxu0 0.0
        %847 = vmatprep.subr.mxu0 0.0
        %848 = vmatpush1.msra.mxu0 0.0
        %849 = vmatprep.subr.mxu0 0.0
        %850 = vmatpush1.msra.mxu0 0.0
        %851 = vmatprep.subr.mxu0 0.0
        %852 = vmatpush1.msra.mxu0 0.0
        %853 = vmatprep.subr.mxu0 0.0
        %854 = vmatpush1.msra.mxu0 0.0
        %855 = vmatprep.subr.mxu0 0.0
        %856 = vmatpush1.msra.mxu0 0.0
        %857 = vmatprep.subr.mxu0 0.0
        %858 = vmatpush1.msra.mxu0 0.0
        %859 = vmatprep.subr.mxu0 0.0
        %860 = vmatpush1.msra.mxu0 0.0
        %861 = vmatprep.subr.mxu0 0.0
        %862 = vmatpush1.msra.mxu0 0.0
        %863 = vmatprep.mubr.f32.mxu0 0.0
        %864 = vmatmul.mubr.f32.gmra.mrb[0].mxu0 %v367
        %v865 = vpop.f32.mrb[0].mxu0
        %v866 = vadd.f32 %v797, %v865
        %v867 = vpop.f32.mrb[0].mxu0
        %868 = vmatprep.mubr.f32.mxu0 0.0
        %869 = vmatmul.mubr.f32.gmra.mrb[0].mxu0 %v370
        %v870 = vpop.f32.mrb[0].mxu0
        %v871 = vadd.f32 %v797, %v870
        %v872 = vpop.f32.mrb[0].mxu0
        %873 = vdwg.mxu0
        %s874 = scalar_lea.vmem %s341, 128
        %v875 = vld [vmem:[%s874] sm:$0xff]
        %v876 = vld [vmem:[%s874 + $0x8] sm:$0xff]
        %v877 = vld [vmem:[%s874 + $0x10] sm:$0xff]
        %v878 = vld [vmem:[%s874 + $0x18] sm:$0xff]
        %v879 = vld [vmem:[%s874 + $0x20] sm:$0xff]
        %v880 = vld [vmem:[%s874 + $0x28] sm:$0xff]
        %v881 = vld [vmem:[%s874 + $0x30] sm:$0xff]
        %v882 = vld [vmem:[%s874 + $0x38] sm:$0xff]
        %v883 = vld [vmem:[%s874 + $0x40] sm:$0xff]
        %v884 = vld [vmem:[%s874 + $0x48] sm:$0xff]
        %v885 = vld [vmem:[%s874 + $0x50] sm:$0xff]
        %v886 = vld [vmem:[%s874 + $0x58] sm:$0xff]
        %v887 = vld [vmem:[%s874 + $0x60] sm:$0xff]
        %v888 = vld [vmem:[%s874 + $0x68] sm:$0xff]
        %v889 = vld [vmem:[%s874 + $0x70] sm:$0xff]
        %v890 = vld [vmem:[%s874 + $0x78] sm:$0xff]
        %s891 = scalar_lea.vmem %s346, 128
        %v892 = vld [vmem:[%s891] sm:$0xff]
        %v893 = vld [vmem:[%s891 + $0x8] sm:$0xff]
        %v894 = vld [vmem:[%s891 + $0x10] sm:$0xff]
        %v895 = vld [vmem:[%s891 + $0x18] sm:$0xff]
        %v896 = vld [vmem:[%s891 + $0x20] sm:$0xff]
        %v897 = vld [vmem:[%s891 + $0x28] sm:$0xff]
        %v898 = vld [vmem:[%s891 + $0x30] sm:$0xff]
        %v899 = vld [vmem:[%s891 + $0x38] sm:$0xff]
        %v900 = vld [vmem:[%s891 + $0x40] sm:$0xff]
        %v901 = vld [vmem:[%s891 + $0x48] sm:$0xff]
        %v902 = vld [vmem:[%s891 + $0x50] sm:$0xff]
        %v903 = vld [vmem:[%s891 + $0x58] sm:$0xff]
        %v904 = vld [vmem:[%s891 + $0x60] sm:$0xff]
        %v905 = vld [vmem:[%s891 + $0x68] sm:$0xff]
        %v906 = vld [vmem:[%s891 + $0x70] sm:$0xff]
        %v907 = vld [vmem:[%s891 + $0x78] sm:$0xff]
        %v909 = vsel %vm479, %v866, 0
        %v912 = vsel %vm479, %v871, 0
        %v915 = vsel %vm479, %v875, 0
        %v918 = vsel %vm479, %v876, 0
        %v921 = vsel %vm479, %v877, 0
        %v924 = vsel %vm479, %v878, 0
        %v927 = vsel %vm479, %v879, 0
        %v930 = vsel %vm479, %v880, 0
        %v933 = vsel %vm479, %v881, 0
        %v936 = vsel %vm479, %v882, 0
        %v939 = vsel %vm479, %v883, 0
        %v942 = vsel %vm479, %v884, 0
        %v945 = vsel %vm479, %v885, 0
        %v948 = vsel %vm479, %v886, 0
        %v951 = vsel %vm479, %v887, 0
        %v954 = vsel %vm479, %v888, 0
        %v957 = vsel %vm479, %v889, 0
        %v960 = vsel %vm479, %v890, 0
        %962 = vmatprep.subr.mxu0 0.0
        %963 = vmatpush1.xpose.msra.mxu0 %v915
        %964 = vmatprep.subr.mxu0 0.0
        %965 = vmatpush1.xpose.msra.mxu0 %v918
        %966 = vmatprep.subr.mxu0 0.0
        %967 = vmatpush1.xpose.msra.mxu0 %v921
        %968 = vmatprep.subr.mxu0 0.0
        %969 = vmatpush1.xpose.msra.mxu0 %v924
        %970 = vmatprep.subr.mxu0 0.0
        %971 = vmatpush1.xpose.msra.mxu0 %v927
        %972 = vmatprep.subr.mxu0 0.0
        %973 = vmatpush1.xpose.msra.mxu0 %v930
        %974 = vmatprep.subr.mxu0 0.0
        %975 = vmatpush1.xpose.msra.mxu0 %v933
        %976 = vmatprep.subr.mxu0 0.0
        %977 = vmatpush1.xpose.msra.mxu0 %v936
        %978 = vmatprep.subr.mxu0 0.0
        %979 = vmatpush1.xpose.msra.mxu0 %v939
        %980 = vmatprep.subr.mxu0 0.0
        %981 = vmatpush1.xpose.msra.mxu0 %v942
        %982 = vmatprep.subr.mxu0 0.0
        %983 = vmatpush1.xpose.msra.mxu0 %v945
        %984 = vmatprep.subr.mxu0 0.0
        %985 = vmatpush1.xpose.msra.mxu0 %v948
        %986 = vmatprep.subr.mxu0 0.0
        %987 = vmatpush1.xpose.msra.mxu0 %v951
        %988 = vmatprep.subr.mxu0 0.0
        %989 = vmatpush1.xpose.msra.mxu0 %v954
        %990 = vmatprep.subr.mxu0 0.0
        %991 = vmatpush1.xpose.msra.mxu0 %v957
        %992 = vmatprep.subr.mxu0 0.0
        %993 = vmatpush1.xpose.msra.mxu0 %v960
        %994 = vmatprep.subr.mxu0 0.0
        %995 = vmatpush1.xpose.msra.mxu0 0.0
        %996 = vmatprep.subr.mxu0 0.0
        %997 = vmatpush1.xpose.msra.mxu0 0.0
        %998 = vmatprep.subr.mxu0 0.0
        %999 = vmatpush1.xpose.msra.mxu0 0.0
        %1000 = vmatprep.subr.mxu0 0.0
        %1001 = vmatpush1.xpose.msra.mxu0 0.0
        %1002 = vmatprep.subr.mxu0 0.0
        %1003 = vmatpush1.xpose.msra.mxu0 0.0
        %1004 = vmatprep.subr.mxu0 0.0
        %1005 = vmatpush1.xpose.msra.mxu0 0.0
        %1006 = vmatprep.subr.mxu0 0.0
        %1007 = vmatpush1.xpose.msra.mxu0 0.0
        %1008 = vmatprep.subr.mxu0 0.0
        %1009 = vmatpush1.xpose.msra.mxu0 0.0
        %1010 = vmatprep.subr.mxu0 0.0
        %1011 = vmatpush1.xpose.msra.mxu0 0.0
        %1012 = vmatprep.subr.mxu0 0.0
        %1013 = vmatpush1.xpose.msra.mxu0 0.0
        %1014 = vmatprep.subr.mxu0 0.0
        %1015 = vmatpush1.xpose.msra.mxu0 0.0
        %1016 = vmatprep.subr.mxu0 0.0
        %1017 = vmatpush1.xpose.msra.mxu0 0.0
        %1018 = vmatprep.subr.mxu0 0.0
        %1019 = vmatpush1.xpose.msra.mxu0 0.0
        %1020 = vmatprep.subr.mxu0 0.0
        %1021 = vmatpush1.xpose.msra.mxu0 0.0
        %1022 = vmatprep.subr.mxu0 0.0
        %1023 = vmatpush1.xpose.msra.mxu0 0.0
        %1024 = vmatprep.subr.mxu0 0.0
        %1025 = vmatpush1.xpose.msra.mxu0 0.0
        %1026 = vmatprep.mubr.f32.mxu0 0.0
        %1027 = vmatmul.mubr.f32.gmra.mrb[0].mxu0 %v909
        %v1028 = vpop.f32.mrb[0].mxu0
        %v1029 = vadd.f32 %v353, %v1028
        %v1030 = vpop.f32.mrb[0].mxu0
        %1031 = vmatprep.mubr.f32.mxu0 0.0
        %1032 = vmatmul.mubr.f32.gmra.mrb[0].mxu0 %v912
        %v1033 = vpop.f32.mrb[0].mxu0
        %v1034 = vadd.f32 %v353, %v1033
        %v1035 = vpop.f32.mrb[0].mxu0
        %1036 = vdwg.mxu0
        %1037 = vmax.xlane.f32.xlu0 %v1029
        %v1038 = vpop.xlane.xlu0 %1037
        %1039 = vmax.xlane.f32.xlu0 %v1034
        %v1040 = vpop.xlane.xlu0 %1039
        %v1041 = vsub.f32 %v1029, %v1038
        %v1042 = vsub.f32 %v1034, %v1040
        %v1043 = vmul.f32 %v1041, 1.442695
        %v1044 = vpow.pop %v1043
        %v1045 = vmul.f32 %v1042, 1.442695
        %v1046 = vpow.pop %v1045
        %1047 = vadd.xlane.f32.xlu0 %v1044
        %v1048 = vpop.xlane.xlu0 %1047
        %1049 = vadd.xlane.f32.xlu0 %v1046
        %v1050 = vpop.xlane.xlu0 %1049
        %v1051 = vrcp.pop %v1048
        %v1052 = vrcp.pop %v1050
        %v1053 = vmul.f32 %v1044, %v1051
        %v1054 = vmul.f32 %v1046, %v1052
        %1055 = vmatprep.subr.mxu0 0.0
        %1056 = vmatpush1.msra.mxu0 %v892
        %1057 = vmatprep.subr.mxu0 0.0
        %1058 = vmatpush1.msra.mxu0 %v893
        %1059 = vmatprep.subr.mxu0 0.0
        %1060 = vmatpush1.msra.mxu0 %v894
        %1061 = vmatprep.subr.mxu0 0.0
        %1062 = vmatpush1.msra.mxu0 %v895
        %1063 = vmatprep.subr.mxu0 0.0
        %1064 = vmatpush1.msra.mxu0 %v896
        %1065 = vmatprep.subr.mxu0 0.0
        %1066 = vmatpush1.msra.mxu0 %v897
        %1067 = vmatprep.subr.mxu0 0.0
        %1068 = vmatpush1.msra.mxu0 %v898
        %1069 = vmatprep.subr.mxu0 0.0
        %1070 = vmatpush1.msra.mxu0 %v899
        %1071 = vmatprep.subr.mxu0 0.0
        %1072 = vmatpush1.msra.mxu0 %v900
        %1073 = vmatprep.subr.mxu0 0.0
        %1074 = vmatpush1.msra.mxu0 %v901
        %1075 = vmatprep.subr.mxu0 0.0
        %1076 = vmatpush1.msra.mxu0 %v902
        %1077 = vmatprep.subr.mxu0 0.0
        %1078 = vmatpush1.msra.mxu0 %v903
        %1079 = vmatprep.subr.mxu0 0.0
        %1080 = vmatpush1.msra.mxu0 %v904
        %1081 = vmatprep.subr.mxu0 0.0
        %1082 = vmatpush1.msra.mxu0 %v905
        %1083 = vmatprep.subr.mxu0 0.0
        %1084 = vmatpush1.msra.mxu0 %v906
        %1085 = vmatprep.subr.mxu0 0.0
        %1086 = vmatpush1.msra.mxu0 %v907
        %1087 = vmatprep.subr.mxu0 0.0
        %1088 = vmatpush1.msra.mxu0 0.0
        %1089 = vmatprep.subr.mxu0 0.0
        %1090 = vmatpush1.msra.mxu0 0.0
        %1091 = vmatprep.subr.mxu0 0.0
        %1092 = vmatpush1.msra.mxu0 0.0
        %1093 = vmatprep.subr.mxu0 0.0
        %1094 = vmatpush1.msra.mxu0 0.0
        %1095 = vmatprep.subr.mxu0 0.0
        %1096 = vmatpush1.msra.mxu0 0.0
        %1097 = vmatprep.subr.mxu0 0.0
        %1098 = vmatpush1.msra.mxu0 0.0
        %1099 = vmatprep.subr.mxu0 0.0
        %1100 = vmatpush1.msra.mxu0 0.0
        %1101 = vmatprep.subr.mxu0 0.0
        %1102 = vmatpush1.msra.mxu0 0.0
        %1103 = vmatprep.subr.mxu0 0.0
        %1104 = vmatpush1.msra.mxu0 0.0
        %1105 = vmatprep.subr.mxu0 0.0
        %1106 = vmatpush1.msra.mxu0 0.0
        %1107 = vmatprep.subr.mxu0 0.0
        %1108 = vmatpush1.msra.mxu0 0.0
        %1109 = vmatprep.subr.mxu0 0.0
        %1110 = vmatpush1.msra.mxu0 0.0
        %1111 = vmatprep.subr.mxu0 0.0
        %1112 = vmatpush1.msra.mxu0 0.0
        %1113 = vmatprep.subr.mxu0 0.0
        %1114 = vmatpush1.msra.mxu0 0.0
        %1115 = vmatprep.subr.mxu0 0.0
        %1116 = vmatpush1.msra.mxu0 0.0
        %1117 = vmatprep.subr.mxu0 0.0
        %1118 = vmatpush1.msra.mxu0 0.0
        %1119 = vmatprep.mubr.f32.mxu0 0.0
        %1120 = vmatmul.mubr.f32.gmra.mrb[0].mxu0 %v1053
        %v1121 = vpop.f32.mrb[0].mxu0
        %v1122 = vadd.f32 0.0, %v1121
        %v1123 = vpop.f32.mrb[0].mxu0
        %1124 = vmatprep.mubr.f32.mxu0 0.0
        %1125 = vmatmul.mubr.f32.gmra.mrb[0].mxu0 %v1054
        %v1126 = vpop.f32.mrb[0].mxu0
        %v1127 = vadd.f32 0.0, %v1126
        %v1128 = vpop.f32.mrb[0].mxu0
        %1129 = vdwg.mxu0
        %s1130 = scalar_lea.vmem %s5, 8
        %v1131 = vld [vmem:[%s1130] sm:$0xff]
        %v1133 = vsel %vm479, %v1122, 0
        %v1136 = vsel %vm479, %v1127, 0
        %1138 = vmatprep.subr.mxu0 0.0
        %1139 = vmatpush1.msra.mxu0 %v1131
        %1140 = vmatprep.subr.mxu0 0.0
        %1141 = vmatpush1.msra.mxu0 0.0
        %1142 = vmatprep.subr.mxu0 0.0
        %1143 = vmatpush1.msra.mxu0 0.0
        %1144 = vmatprep.subr.mxu0 0.0
        %1145 = vmatpush1.msra.mxu0 0.0
        %1146 = vmatprep.subr.mxu0 0.0
        %1147 = vmatpush1.msra.mxu0 0.0
        %1148 = vmatprep.subr.mxu0 0.0
        %1149 = vmatpush1.msra.mxu0 0.0
        %1150 = vmatprep.subr.mxu0 0.0
        %1151 = vmatpush1.msra.mxu0 0.0
        %1152 = vmatprep.subr.mxu0 0.0
        %1153 = vmatpush1.msra.mxu0 0.0
        %1154 = vmatprep.subr.mxu0 0.0
        %1155 = vmatpush1.msra.mxu0 0.0
        %1156 = vmatprep.subr.mxu0 0.0
        %1157 = vmatpush1.msra.mxu0 0.0
        %1158 = vmatprep.subr.mxu0 0.0
        %1159 = vmatpush1.msra.mxu0 0.0
        %1160 = vmatprep.subr.mxu0 0.0
        %1161 = vmatpush1.msra.mxu0 0.0
        %1162 = vmatprep.subr.mxu0 0.0
        %1163 = vmatpush1.msra.mxu0 0.0
        %1164 = vmatprep.subr.mxu0 0.0
        %1165 = vmatpush1.msra.mxu0 0.0
        %1166 = vmatprep.subr.mxu0 0.0
        %1167 = vmatpush1.msra.mxu0 0.0
        %1168 = vmatprep.subr.mxu0 0.0
        %1169 = vmatpush1.msra.mxu0 0.0
        %1170 = vmatprep.subr.mxu0 0.0
        %1171 = vmatpush1.msra.mxu0 0.0
        %1172 = vmatprep.subr.mxu0 0.0
        %1173 = vmatpush1.msra.mxu0 0.0
        %1174 = vmatprep.subr.mxu0 0.0
        %1175 = vmatpush1.msra.mxu0 0.0
        %1176 = vmatprep.subr.mxu0 0.0
        %1177 = vmatpush1.msra.mxu0 0.0
        %1178 = vmatprep.subr.mxu0 0.0
        %1179 = vmatpush1.msra.mxu0 0.0
        %1180 = vmatprep.subr.mxu0 0.0
        %1181 = vmatpush1.msra.mxu0 0.0
        %1182 = vmatprep.subr.mxu0 0.0
        %1183 = vmatpush1.msra.mxu0 0.0
        %1184 = vmatprep.subr.mxu0 0.0
        %1185 = vmatpush1.msra.mxu0 0.0
        %1186 = vmatprep.subr.mxu0 0.0
        %1187 = vmatpush1.msra.mxu0 0.0
        %1188 = vmatprep.subr.mxu0 0.0
        %1189 = vmatpush1.msra.mxu0 0.0
        %1190 = vmatprep.subr.mxu0 0.0
        %1191 = vmatpush1.msra.mxu0 0.0
        %1192 = vmatprep.subr.mxu0 0.0
        %1193 = vmatpush1.msra.mxu0 0.0
        %1194 = vmatprep.subr.mxu0 0.0
        %1195 = vmatpush1.msra.mxu0 0.0
        %1196 = vmatprep.subr.mxu0 0.0
        %1197 = vmatpush1.msra.mxu0 0.0
        %1198 = vmatprep.subr.mxu0 0.0
        %1199 = vmatpush1.msra.mxu0 0.0
        %1200 = vmatprep.subr.mxu0 0.0
        %1201 = vmatpush1.msra.mxu0 0.0
        %1202 = vmatprep.mubr.f32.mxu0 0.0
        %1203 = vmatmul.mubr.f32.gmra.mrb[0].mxu0 %v1133
        %v1204 = vpop.f32.mrb[0].mxu0
        %v1205 = vadd.f32 0.0, %v1204
        %v1206 = vpop.f32.mrb[0].mxu0
        %1207 = vmatprep.mubr.f32.mxu0 0.0
        %1208 = vmatmul.mubr.f32.gmra.mrb[0].mxu0 %v1136
        %v1209 = vpop.f32.mrb[0].mxu0
        %v1210 = vadd.f32 0.0, %v1209
        %v1211 = vpop.f32.mrb[0].mxu0
        %1212 = vdwg.mxu0
        %v1213 = vld [vmem:[#allocation2] sm:$0xff]
        %v1214 = vld [vmem:[#allocation2 + $0x8] sm:$0xff]
        %v1215 = vadd.f32 %v1213, %v1205
        %v1216 = vadd.f32 %v1214, %v1210
        %1217 = vst.msk [vmem:[#allocation2] sm:$0xff] %vm365, %v1215
        %1218 = vst.msk [vmem:[#allocation2 + $0x8] sm:$0xff] %vm365, %v1216
        %s1219 = scalar_lea.vmem %s3, 64
        %v1220 = vld [vmem:[%s1219] sm:$0xff]
        %v1221 = vld [vmem:[%s1219 + $0x8] sm:$0xff]
        %v1222 = vld [vmem:[%s1219 + $0x10] sm:$0xff]
        %v1223 = vld [vmem:[%s1219 + $0x18] sm:$0xff]
        %s1224 = scalar_lea.vmem %s4, 2
        %v1225 = vld [vmem:[%s1224] sm:$0x1]
        %v1227 = vlaneseq
        %v1228 = vshrl.u32 %v1227, 7
        %v1229 = vsub.s32 0, %v1228
        %v1230 = vrot.slane %v1225, %v1229
        %1232 = vmatprep.subr.mxu0 0.0
        %1233 = vmatpush1.msra.mxu0 %v1220
        %1234 = vmatprep.subr.mxu0 0.0
        %1235 = vmatpush1.msra.mxu0 %v1221
        %1236 = vmatprep.subr.mxu0 0.0
        %1237 = vmatpush1.msra.mxu0 %v1222
        %1238 = vmatprep.subr.mxu0 0.0
        %1239 = vmatpush1.msra.mxu0 %v1223
        %1240 = vmatprep.subr.mxu0 0.0
        %1241 = vmatpush1.msra.mxu0 0.0
        %1242 = vmatprep.subr.mxu0 0.0
        %1243 = vmatpush1.msra.mxu0 0.0
        %1244 = vmatprep.subr.mxu0 0.0
        %1245 = vmatpush1.msra.mxu0 0.0
        %1246 = vmatprep.subr.mxu0 0.0
        %1247 = vmatpush1.msra.mxu0 0.0
        %1248 = vmatprep.subr.mxu0 0.0
        %1249 = vmatpush1.msra.mxu0 0.0
        %1250 = vmatprep.subr.mxu0 0.0
        %1251 = vmatpush1.msra.mxu0 0.0
        %1252 = vmatprep.subr.mxu0 0.0
        %1253 = vmatpush1.msra.mxu0 0.0
        %1254 = vmatprep.subr.mxu0 0.0
        %1255 = vmatpush1.msra.mxu0 0.0
        %1256 = vmatprep.subr.mxu0 0.0
        %1257 = vmatpush1.msra.mxu0 0.0
        %1258 = vmatprep.subr.mxu0 0.0
        %1259 = vmatpush1.msra.mxu0 0.0
        %1260 = vmatprep.subr.mxu0 0.0
        %1261 = vmatpush1.msra.mxu0 0.0
        %1262 = vmatprep.subr.mxu0 0.0
        %1263 = vmatpush1.msra.mxu0 0.0
        %1264 = vmatprep.subr.mxu0 0.0
        %1265 = vmatpush1.msra.mxu0 0.0
        %1266 = vmatprep.subr.mxu0 0.0
        %1267 = vmatpush1.msra.mxu0 0.0
        %1268 = vmatprep.subr.mxu0 0.0
        %1269 = vmatpush1.msra.mxu0 0.0
        %1270 = vmatprep.subr.mxu0 0.0
        %1271 = vmatpush1.msra.mxu0 0.0
        %1272 = vmatprep.subr.mxu0 0.0
        %1273 = vmatpush1.msra.mxu0 0.0
        %1274 = vmatprep.subr.mxu0 0.0
        %1275 = vmatpush1.msra.mxu0 0.0
        %1276 = vmatprep.subr.mxu0 0.0
        %1277 = vmatpush1.msra.mxu0 0.0
        %1278 = vmatprep.subr.mxu0 0.0
        %1279 = vmatpush1.msra.mxu0 0.0
        %1280 = vmatprep.subr.mxu0 0.0
        %1281 = vmatpush1.msra.mxu0 0.0
        %1282 = vmatprep.subr.mxu0 0.0
        %1283 = vmatpush1.msra.mxu0 0.0
        %1284 = vmatprep.subr.mxu0 0.0
        %1285 = vmatpush1.msra.mxu0 0.0
        %1286 = vmatprep.subr.mxu0 0.0
        %1287 = vmatpush1.msra.mxu0 0.0
        %1288 = vmatprep.subr.mxu0 0.0
        %1289 = vmatpush1.msra.mxu0 0.0
        %1290 = vmatprep.subr.mxu0 0.0
        %1291 = vmatpush1.msra.mxu0 0.0
        %1292 = vmatprep.subr.mxu0 0.0
        %1293 = vmatpush1.msra.mxu0 0.0
        %1294 = vmatprep.subr.mxu0 0.0
        %1295 = vmatpush1.msra.mxu0 0.0
        %1296 = vmatprep.mubr.f32.mxu0 0.0
        %1297 = vmatmul.mubr.f32.gmra.mrb[0].mxu0 %v367
        %v1298 = vpop.f32.mrb[0].mxu0
        %v1299 = vadd.f32 %v1230, %v1298
        %v1300 = vpop.f32.mrb[0].mxu0
        %1301 = vmatprep.mubr.f32.mxu0 0.0
        %1302 = vmatmul.mubr.f32.gmra.mrb[0].mxu0 %v370
        %v1303 = vpop.f32.mrb[0].mxu0
        %v1304 = vadd.f32 %v1230, %v1303
        %v1305 = vpop.f32.mrb[0].mxu0
        %1306 = vdwg.mxu0
        %s1307 = scalar_lea.vmem %s341, 256
        %v1308 = vld [vmem:[%s1307] sm:$0xff]
        %v1309 = vld [vmem:[%s1307 + $0x8] sm:$0xff]
        %v1310 = vld [vmem:[%s1307 + $0x10] sm:$0xff]
        %v1311 = vld [vmem:[%s1307 + $0x18] sm:$0xff]
        %v1312 = vld [vmem:[%s1307 + $0x20] sm:$0xff]
        %v1313 = vld [vmem:[%s1307 + $0x28] sm:$0xff]
        %v1314 = vld [vmem:[%s1307 + $0x30] sm:$0xff]
        %v1315 = vld [vmem:[%s1307 + $0x38] sm:$0xff]
        %v1316 = vld [vmem:[%s1307 + $0x40] sm:$0xff]
        %v1317 = vld [vmem:[%s1307 + $0x48] sm:$0xff]
        %v1318 = vld [vmem:[%s1307 + $0x50] sm:$0xff]
        %v1319 = vld [vmem:[%s1307 + $0x58] sm:$0xff]
        %v1320 = vld [vmem:[%s1307 + $0x60] sm:$0xff]
        %v1321 = vld [vmem:[%s1307 + $0x68] sm:$0xff]
        %v1322 = vld [vmem:[%s1307 + $0x70] sm:$0xff]
        %v1323 = vld [vmem:[%s1307 + $0x78] sm:$0xff]
        %s1324 = scalar_lea.vmem %s346, 256
        %v1325 = vld [vmem:[%s1324] sm:$0xff]
        %v1326 = vld [vmem:[%s1324 + $0x8] sm:$0xff]
        %v1327 = vld [vmem:[%s1324 + $0x10] sm:$0xff]
        %v1328 = vld [vmem:[%s1324 + $0x18] sm:$0xff]
        %v1329 = vld [vmem:[%s1324 + $0x20] sm:$0xff]
        %v1330 = vld [vmem:[%s1324 + $0x28] sm:$0xff]
        %v1331 = vld [vmem:[%s1324 + $0x30] sm:$0xff]
        %v1332 = vld [vmem:[%s1324 + $0x38] sm:$0xff]
        %v1333 = vld [vmem:[%s1324 + $0x40] sm:$0xff]
        %v1334 = vld [vmem:[%s1324 + $0x48] sm:$0xff]
        %v1335 = vld [vmem:[%s1324 + $0x50] sm:$0xff]
        %v1336 = vld [vmem:[%s1324 + $0x58] sm:$0xff]
        %v1337 = vld [vmem:[%s1324 + $0x60] sm:$0xff]
        %v1338 = vld [vmem:[%s1324 + $0x68] sm:$0xff]
        %v1339 = vld [vmem:[%s1324 + $0x70] sm:$0xff]
        %v1340 = vld [vmem:[%s1324 + $0x78] sm:$0xff]
        %v1342 = vsel %vm479, %v1299, 0
        %v1345 = vsel %vm479, %v1304, 0
        %v1348 = vsel %vm479, %v1308, 0
        %v1351 = vsel %vm479, %v1309, 0
        %v1354 = vsel %vm479, %v1310, 0
        %v1357 = vsel %vm479, %v1311, 0
        %v1360 = vsel %vm479, %v1312, 0
        %v1363 = vsel %vm479, %v1313, 0
        %v1366 = vsel %vm479, %v1314, 0
        %v1369 = vsel %vm479, %v1315, 0
        %v1372 = vsel %vm479, %v1316, 0
        %v1375 = vsel %vm479, %v1317, 0
        %v1378 = vsel %vm479, %v1318, 0
        %v1381 = vsel %vm479, %v1319, 0
        %v1384 = vsel %vm479, %v1320, 0
        %v1387 = vsel %vm479, %v1321, 0
        %v1390 = vsel %vm479, %v1322, 0
        %v1393 = vsel %vm479, %v1323, 0
        %1395 = vmatprep.subr.mxu0 0.0
        %1396 = vmatpush1.xpose.msra.mxu0 %v1348
        %1397 = vmatprep.subr.mxu0 0.0
        %1398 = vmatpush1.xpose.msra.mxu0 %v1351
        %1399 = vmatprep.subr.mxu0 0.0
        %1400 = vmatpush1.xpose.msra.mxu0 %v1354
        %1401 = vmatprep.subr.mxu0 0.0
        %1402 = vmatpush1.xpose.msra.mxu0 %v1357
        %1403 = vmatprep.subr.mxu0 0.0
        %1404 = vmatpush1.xpose.msra.mxu0 %v1360
        %1405 = vmatprep.subr.mxu0 0.0
        %1406 = vmatpush1.xpose.msra.mxu0 %v1363
        %1407 = vmatprep.subr.mxu0 0.0
        %1408 = vmatpush1.xpose.msra.mxu0 %v1366
        %1409 = vmatprep.subr.mxu0 0.0
        %1410 = vmatpush1.xpose.msra.mxu0 %v1369
        %1411 = vmatprep.subr.mxu0 0.0
        %1412 = vmatpush1.xpose.msra.mxu0 %v1372
        %1413 = vmatprep.subr.mxu0 0.0
        %1414 = vmatpush1.xpose.msra.mxu0 %v1375
        %1415 = vmatprep.subr.mxu0 0.0
        %1416 = vmatpush1.xpose.msra.mxu0 %v1378
        %1417 = vmatprep.subr.mxu0 0.0
        %1418 = vmatpush1.xpose.msra.mxu0 %v1381
        %1419 = vmatprep.subr.mxu0 0.0
        %1420 = vmatpush1.xpose.msra.mxu0 %v1384
        %1421 = vmatprep.subr.mxu0 0.0
        %1422 = vmatpush1.xpose.msra.mxu0 %v1387
        %1423 = vmatprep.subr.mxu0 0.0
        %1424 = vmatpush1.xpose.msra.mxu0 %v1390
        %1425 = vmatprep.subr.mxu0 0.0
        %1426 = vmatpush1.xpose.msra.mxu0 %v1393
        %1427 = vmatprep.subr.mxu0 0.0
        %1428 = vmatpush1.xpose.msra.mxu0 0.0
        %1429 = vmatprep.subr.mxu0 0.0
        %1430 = vmatpush1.xpose.msra.mxu0 0.0
        %1431 = vmatprep.subr.mxu0 0.0
        %1432 = vmatpush1.xpose.msra.mxu0 0.0
        %1433 = vmatprep.subr.mxu0 0.0
        %1434 = vmatpush1.xpose.msra.mxu0 0.0
        %1435 = vmatprep.subr.mxu0 0.0
        %1436 = vmatpush1.xpose.msra.mxu0 0.0
        %1437 = vmatprep.subr.mxu0 0.0
        %1438 = vmatpush1.xpose.msra.mxu0 0.0
        %1439 = vmatprep.subr.mxu0 0.0
        %1440 = vmatpush1.xpose.msra.mxu0 0.0
        %1441 = vmatprep.subr.mxu0 0.0
        %1442 = vmatpush1.xpose.msra.mxu0 0.0
        %1443 = vmatprep.subr.mxu0 0.0
        %1444 = vmatpush1.xpose.msra.mxu0 0.0
        %1445 = vmatprep.subr.mxu0 0.0
        %1446 = vmatpush1.xpose.msra.mxu0 0.0
        %1447 = vmatprep.subr.mxu0 0.0
        %1448 = vmatpush1.xpose.msra.mxu0 0.0
        %1449 = vmatprep.subr.mxu0 0.0
        %1450 = vmatpush1.xpose.msra.mxu0 0.0
        %1451 = vmatprep.subr.mxu0 0.0
        %1452 = vmatpush1.xpose.msra.mxu0 0.0
        %1453 = vmatprep.subr.mxu0 0.0
        %1454 = vmatpush1.xpose.msra.mxu0 0.0
        %1455 = vmatprep.subr.mxu0 0.0
        %1456 = vmatpush1.xpose.msra.mxu0 0.0
        %1457 = vmatprep.subr.mxu0 0.0
        %1458 = vmatpush1.xpose.msra.mxu0 0.0
        %1459 = vmatprep.mubr.f32.mxu0 0.0
        %1460 = vmatmul.mubr.f32.gmra.mrb[0].mxu0 %v1342
        %v1461 = vpop.f32.mrb[0].mxu0
        %v1462 = vadd.f32 %v353, %v1461
        %v1463 = vpop.f32.mrb[0].mxu0
        %1464 = vmatprep.mubr.f32.mxu0 0.0
        %1465 = vmatmul.mubr.f32.gmra.mrb[0].mxu0 %v1345
        %v1466 = vpop.f32.mrb[0].mxu0
        %v1467 = vadd.f32 %v353, %v1466
        %v1468 = vpop.f32.mrb[0].mxu0
        %1469 = vdwg.mxu0
        %1470 = vmax.xlane.f32.xlu0 %v1462
        %v1471 = vpop.xlane.xlu0 %1470
        %1472 = vmax.xlane.f32.xlu0 %v1467
        %v1473 = vpop.xlane.xlu0 %1472
        %v1474 = vsub.f32 %v1462, %v1471
        %v1475 = vsub.f32 %v1467, %v1473
        %v1476 = vmul.f32 %v1474, 1.442695
        %v1477 = vpow.pop %v1476
        %v1478 = vmul.f32 %v1475, 1.442695
        %v1479 = vpow.pop %v1478
        %1480 = vadd.xlane.f32.xlu0 %v1477
        %v1481 = vpop.xlane.xlu0 %1480
        %1482 = vadd.xlane.f32.xlu0 %v1479
        %v1483 = vpop.xlane.xlu0 %1482
        %v1484 = vrcp.pop %v1481
        %v1485 = vrcp.pop %v1483
        %v1486 = vmul.f32 %v1477, %v1484
        %v1487 = vmul.f32 %v1479, %v1485
        %1488 = vmatprep.subr.mxu0 0.0
        %1489 = vmatpush1.msra.mxu0 %v1325
        %1490 = vmatprep.subr.mxu0 0.0
        %1491 = vmatpush1.msra.mxu0 %v1326
        %1492 = vmatprep.subr.mxu0 0.0
        %1493 = vmatpush1.msra.mxu0 %v1327
        %1494 = vmatprep.subr.mxu0 0.0
        %1495 = vmatpush1.msra.mxu0 %v1328
        %1496 = vmatprep.subr.mxu0 0.0
        %1497 = vmatpush1.msra.mxu0 %v1329
        %1498 = vmatprep.subr.mxu0 0.0
        %1499 = vmatpush1.msra.mxu0 %v1330
        %1500 = vmatprep.subr.mxu0 0.0
        %1501 = vmatpush1.msra.mxu0 %v1331
        %1502 = vmatprep.subr.mxu0 0.0
        %1503 = vmatpush1.msra.mxu0 %v1332
        %1504 = vmatprep.subr.mxu0 0.0
        %1505 = vmatpush1.msra.mxu0 %v1333
        %1506 = vmatprep.subr.mxu0 0.0
        %1507 = vmatpush1.msra.mxu0 %v1334
        %1508 = vmatprep.subr.mxu0 0.0
        %1509 = vmatpush1.msra.mxu0 %v1335
        %1510 = vmatprep.subr.mxu0 0.0
        %1511 = vmatpush1.msra.mxu0 %v1336
        %1512 = vmatprep.subr.mxu0 0.0
        %1513 = vmatpush1.msra.mxu0 %v1337
        %1514 = vmatprep.subr.mxu0 0.0
        %1515 = vmatpush1.msra.mxu0 %v1338
        %1516 = vmatprep.subr.mxu0 0.0
        %1517 = vmatpush1.msra.mxu0 %v1339
        %1518 = vmatprep.subr.mxu0 0.0
        %1519 = vmatpush1.msra.mxu0 %v1340
        %1520 = vmatprep.subr.mxu0 0.0
        %1521 = vmatpush1.msra.mxu0 0.0
        %1522 = vmatprep.subr.mxu0 0.0
        %1523 = vmatpush1.msra.mxu0 0.0
        %1524 = vmatprep.subr.mxu0 0.0
        %1525 = vmatpush1.msra.mxu0 0.0
        %1526 = vmatprep.subr.mxu0 0.0
        %1527 = vmatpush1.msra.mxu0 0.0
        %1528 = vmatprep.subr.mxu0 0.0
        %1529 = vmatpush1.msra.mxu0 0.0
        %1530 = vmatprep.subr.mxu0 0.0
        %1531 = vmatpush1.msra.mxu0 0.0
        %1532 = vmatprep.subr.mxu0 0.0
        %1533 = vmatpush1.msra.mxu0 0.0
        %1534 = vmatprep.subr.mxu0 0.0
        %1535 = vmatpush1.msra.mxu0 0.0
        %1536 = vmatprep.subr.mxu0 0.0
        %1537 = vmatpush1.msra.mxu0 0.0
        %1538 = vmatprep.subr.mxu0 0.0
        %1539 = vmatpush1.msra.mxu0 0.0
        %1540 = vmatprep.subr.mxu0 0.0
        %1541 = vmatpush1.msra.mxu0 0.0
        %1542 = vmatprep.subr.mxu0 0.0
        %1543 = vmatpush1.msra.mxu0 0.0
        %1544 = vmatprep.subr.mxu0 0.0
        %1545 = vmatpush1.msra.mxu0 0.0
        %1546 = vmatprep.subr.mxu0 0.0
        %1547 = vmatpush1.msra.mxu0 0.0
        %1548 = vmatprep.subr.mxu0 0.0
        %1549 = vmatpush1.msra.mxu0 0.0
        %1550 = vmatprep.subr.mxu0 0.0
        %1551 = vmatpush1.msra.mxu0 0.0
        %1552 = vmatprep.mubr.f32.mxu0 0.0
        %1553 = vmatmul.mubr.f32.gmra.mrb[0].mxu0 %v1486
        %v1554 = vpop.f32.mrb[0].mxu0
        %v1555 = vadd.f32 0.0, %v1554
        %v1556 = vpop.f32.mrb[0].mxu0
        %1557 = vmatprep.mubr.f32.mxu0 0.0
        %1558 = vmatmul.mubr.f32.gmra.mrb[0].mxu0 %v1487
        %v1559 = vpop.f32.mrb[0].mxu0
        %v1560 = vadd.f32 0.0, %v1559
        %v1561 = vpop.f32.mrb[0].mxu0
        %1562 = vdwg.mxu0
        %s1563 = scalar_lea.vmem %s5, 16
        %v1564 = vld [vmem:[%s1563] sm:$0xff]
        %v1566 = vsel %vm479, %v1555, 0
        %v1569 = vsel %vm479, %v1560, 0
        %1571 = vmatprep.subr.mxu0 0.0
        %1572 = vmatpush1.msra.mxu0 %v1564
        %1573 = vmatprep.subr.mxu0 0.0
        %1574 = vmatpush1.msra.mxu0 0.0
        %1575 = vmatprep.subr.mxu0 0.0
        %1576 = vmatpush1.msra.mxu0 0.0
        %1577 = vmatprep.subr.mxu0 0.0
        %1578 = vmatpush1.msra.mxu0 0.0
        %1579 = vmatprep.subr.mxu0 0.0
        %1580 = vmatpush1.msra.mxu0 0.0
        %1581 = vmatprep.subr.mxu0 0.0
        %1582 = vmatpush1.msra.mxu0 0.0
        %1583 = vmatprep.subr.mxu0 0.0
        %1584 = vmatpush1.msra.mxu0 0.0
        %1585 = vmatprep.subr.mxu0 0.0
        %1586 = vmatpush1.msra.mxu0 0.0
        %1587 = vmatprep.subr.mxu0 0.0
        %1588 = vmatpush1.msra.mxu0 0.0
        %1589 = vmatprep.subr.mxu0 0.0
        %1590 = vmatpush1.msra.mxu0 0.0
        %1591 = vmatprep.subr.mxu0 0.0
        %1592 = vmatpush1.msra.mxu0 0.0
        %1593 = vmatprep.subr.mxu0 0.0
        %1594 = vmatpush1.msra.mxu0 0.0
        %1595 = vmatprep.subr.mxu0 0.0
        %1596 = vmatpush1.msra.mxu0 0.0
        %1597 = vmatprep.subr.mxu0 0.0
        %1598 = vmatpush1.msra.mxu0 0.0
        %1599 = vmatprep.subr.mxu0 0.0
        %1600 = vmatpush1.msra.mxu0 0.0
        %1601 = vmatprep.subr.mxu0 0.0
        %1602 = vmatpush1.msra.mxu0 0.0
        %1603 = vmatprep.subr.mxu0 0.0
        %1604 = vmatpush1.msra.mxu0 0.0
        %1605 = vmatprep.subr.mxu0 0.0
        %1606 = vmatpush1.msra.mxu0 0.0
        %1607 = vmatprep.subr.mxu0 0.0
        %1608 = vmatpush1.msra.mxu0 0.0
        %1609 = vmatprep.subr.mxu0 0.0
        %1610 = vmatpush1.msra.mxu0 0.0
        %1611 = vmatprep.subr.mxu0 0.0
        %1612 = vmatpush1.msra.mxu0 0.0
        %1613 = vmatprep.subr.mxu0 0.0
        %1614 = vmatpush1.msra.mxu0 0.0
        %1615 = vmatprep.subr.mxu0 0.0
        %1616 = vmatpush1.msra.mxu0 0.0
        %1617 = vmatprep.subr.mxu0 0.0
        %1618 = vmatpush1.msra.mxu0 0.0
        %1619 = vmatprep.subr.mxu0 0.0
        %1620 = vmatpush1.msra.mxu0 0.0
        %1621 = vmatprep.subr.mxu0 0.0
        %1622 = vmatpush1.msra.mxu0 0.0
        %1623 = vmatprep.subr.mxu0 0.0
        %1624 = vmatpush1.msra.mxu0 0.0
        %1625 = vmatprep.subr.mxu0 0.0
        %1626 = vmatpush1.msra.mxu0 0.0
        %1627 = vmatprep.subr.mxu0 0.0
        %1628 = vmatpush1.msra.mxu0 0.0
        %1629 = vmatprep.subr.mxu0 0.0
        %1630 = vmatpush1.msra.mxu0 0.0
        %1631 = vmatprep.subr.mxu0 0.0
        %1632 = vmatpush1.msra.mxu0 0.0
        %1633 = vmatprep.subr.mxu0 0.0
        %1634 = vmatpush1.msra.mxu0 0.0
        %1635 = vmatprep.mubr.f32.mxu0 0.0
        %1636 = vmatmul.mubr.f32.gmra.mrb[0].mxu0 %v1566
        %v1637 = vpop.f32.mrb[0].mxu0
        %v1638 = vadd.f32 0.0, %v1637
        %v1639 = vpop.f32.mrb[0].mxu0
        %1640 = vmatprep.mubr.f32.mxu0 0.0
        %1641 = vmatmul.mubr.f32.gmra.mrb[0].mxu0 %v1569
        %v1642 = vpop.f32.mrb[0].mxu0
        %v1643 = vadd.f32 0.0, %v1642
        %v1644 = vpop.f32.mrb[0].mxu0
        %1645 = vdwg.mxu0
        %v1646 = vld [vmem:[#allocation2] sm:$0xff]
        %v1647 = vld [vmem:[#allocation2 + $0x8] sm:$0xff]
        %v1648 = vadd.f32 %v1646, %v1638
        %v1649 = vadd.f32 %v1647, %v1643
        %1650 = vst.msk [vmem:[#allocation2] sm:$0xff] %vm365, %v1648
        %1651 = vst.msk [vmem:[#allocation2 + $0x8] sm:$0xff] %vm365, %v1649
        %s1652 = scalar_lea.vmem %s3, 96
        %v1653 = vld [vmem:[%s1652] sm:$0xff]
        %v1654 = vld [vmem:[%s1652 + $0x8] sm:$0xff]
        %v1655 = vld [vmem:[%s1652 + $0x10] sm:$0xff]
        %v1656 = vld [vmem:[%s1652 + $0x18] sm:$0xff]
        %s1657 = scalar_lea.vmem %s4, 3
        %v1658 = vld [vmem:[%s1657] sm:$0x1]
        %v1660 = vlaneseq
        %v1661 = vshrl.u32 %v1660, 7
        %v1662 = vsub.s32 0, %v1661
        %v1663 = vrot.slane %v1658, %v1662
        %1665 = vmatprep.subr.mxu0 0.0
        %1666 = vmatpush1.msra.mxu0 %v1653
        %1667 = vmatprep.subr.mxu0 0.0
        %1668 = vmatpush1.msra.mxu0 %v1654
        %1669 = vmatprep.subr.mxu0 0.0
        %1670 = vmatpush1.msra.mxu0 %v1655
        %1671 = vmatprep.subr.mxu0 0.0
        %1672 = vmatpush1.msra.mxu0 %v1656
        %1673 = vmatprep.subr.mxu0 0.0
        %1674 = vmatpush1.msra.mxu0 0.0
        %1675 = vmatprep.subr.mxu0 0.0
        %1676 = vmatpush1.msra.mxu0 0.0
        %1677 = vmatprep.subr.mxu0 0.0
        %1678 = vmatpush1.msra.mxu0 0.0
        %1679 = vmatprep.subr.mxu0 0.0
        %1680 = vmatpush1.msra.mxu0 0.0
        %1681 = vmatprep.subr.mxu0 0.0
        %1682 = vmatpush1.msra.mxu0 0.0
        %1683 = vmatprep.subr.mxu0 0.0
        %1684 = vmatpush1.msra.mxu0 0.0
        %1685 = vmatprep.subr.mxu0 0.0
        %1686 = vmatpush1.msra.mxu0 0.0
        %1687 = vmatprep.subr.mxu0 0.0
        %1688 = vmatpush1.msra.mxu0 0.0
        %1689 = vmatprep.subr.mxu0 0.0
        %1690 = vmatpush1.msra.mxu0 0.0
        %1691 = vmatprep.subr.mxu0 0.0
        %1692 = vmatpush1.msra.mxu0 0.0
        %1693 = vmatprep.subr.mxu0 0.0
        %1694 = vmatpush1.msra.mxu0 0.0
        %1695 = vmatprep.subr.mxu0 0.0
        %1696 = vmatpush1.msra.mxu0 0.0
        %1697 = vmatprep.subr.mxu0 0.0
        %1698 = vmatpush1.msra.mxu0 0.0
        %1699 = vmatprep.subr.mxu0 0.0
        %1700 = vmatpush1.msra.mxu0 0.0
        %1701 = vmatprep.subr.mxu0 0.0
        %1702 = vmatpush1.msra.mxu0 0.0
        %1703 = vmatprep.subr.mxu0 0.0
        %1704 = vmatpush1.msra.mxu0 0.0
        %1705 = vmatprep.subr.mxu0 0.0
        %1706 = vmatpush1.msra.mxu0 0.0
        %1707 = vmatprep.subr.mxu0 0.0
        %1708 = vmatpush1.msra.mxu0 0.0
        %1709 = vmatprep.subr.mxu0 0.0
        %1710 = vmatpush1.msra.mxu0 0.0
        %1711 = vmatprep.subr.mxu0 0.0
        %1712 = vmatpush1.msra.mxu0 0.0
        %1713 = vmatprep.subr.mxu0 0.0
        %1714 = vmatpush1.msra.mxu0 0.0
        %1715 = vmatprep.subr.mxu0 0.0
        %1716 = vmatpush1.msra.mxu0 0.0
        %1717 = vmatprep.subr.mxu0 0.0
        %1718 = vmatpush1.msra.mxu0 0.0
        %1719 = vmatprep.subr.mxu0 0.0
        %1720 = vmatpush1.msra.mxu0 0.0
        %1721 = vmatprep.subr.mxu0 0.0
        %1722 = vmatpush1.msra.mxu0 0.0
        %1723 = vmatprep.subr.mxu0 0.0
        %1724 = vmatpush1.msra.mxu0 0.0
        %1725 = vmatprep.subr.mxu0 0.0
        %1726 = vmatpush1.msra.mxu0 0.0
        %1727 = vmatprep.subr.mxu0 0.0
        %1728 = vmatpush1.msra.mxu0 0.0
        %1729 = vmatprep.mubr.f32.mxu0 0.0
        %1730 = vmatmul.mubr.f32.gmra.mrb[0].mxu0 %v367
        %v1731 = vpop.f32.mrb[0].mxu0
        %v1732 = vadd.f32 %v1663, %v1731
        %v1733 = vpop.f32.mrb[0].mxu0
        %1734 = vmatprep.mubr.f32.mxu0 0.0
        %1735 = vmatmul.mubr.f32.gmra.mrb[0].mxu0 %v370
        %v1736 = vpop.f32.mrb[0].mxu0
        %v1737 = vadd.f32 %v1663, %v1736
        %v1738 = vpop.f32.mrb[0].mxu0
        %1739 = vdwg.mxu0
        %s1740 = scalar_lea.vmem %s341, 384
        %v1741 = vld [vmem:[%s1740] sm:$0xff]
        %v1742 = vld [vmem:[%s1740 + $0x8] sm:$0xff]
        %v1743 = vld [vmem:[%s1740 + $0x10] sm:$0xff]
        %v1744 = vld [vmem:[%s1740 + $0x18] sm:$0xff]
        %v1745 = vld [vmem:[%s1740 + $0x20] sm:$0xff]
        %v1746 = vld [vmem:[%s1740 + $0x28] sm:$0xff]
        %v1747 = vld [vmem:[%s1740 + $0x30] sm:$0xff]
        %v1748 = vld [vmem:[%s1740 + $0x38] sm:$0xff]
        %v1749 = vld [vmem:[%s1740 + $0x40] sm:$0xff]
        %v1750 = vld [vmem:[%s1740 + $0x48] sm:$0xff]
        %v1751 = vld [vmem:[%s1740 + $0x50] sm:$0xff]
        %v1752 = vld [vmem:[%s1740 + $0x58] sm:$0xff]
        %v1753 = vld [vmem:[%s1740 + $0x60] sm:$0xff]
        %v1754 = vld [vmem:[%s1740 + $0x68] sm:$0xff]
        %v1755 = vld [vmem:[%s1740 + $0x70] sm:$0xff]
        %v1756 = vld [vmem:[%s1740 + $0x78] sm:$0xff]
        %s1757 = scalar_lea.vmem %s346, 384
        %v1758 = vld [vmem:[%s1757] sm:$0xff]
        %v1759 = vld [vmem:[%s1757 + $0x8] sm:$0xff]
        %v1760 = vld [vmem:[%s1757 + $0x10] sm:$0xff]
        %v1761 = vld [vmem:[%s1757 + $0x18] sm:$0xff]
        %v1762 = vld [vmem:[%s1757 + $0x20] sm:$0xff]
        %v1763 = vld [vmem:[%s1757 + $0x28] sm:$0xff]
        %v1764 = vld [vmem:[%s1757 + $0x30] sm:$0xff]
        %v1765 = vld [vmem:[%s1757 + $0x38] sm:$0xff]
        %v1766 = vld [vmem:[%s1757 + $0x40] sm:$0xff]
        %v1767 = vld [vmem:[%s1757 + $0x48] sm:$0xff]
        %v1768 = vld [vmem:[%s1757 + $0x50] sm:$0xff]
        %v1769 = vld [vmem:[%s1757 + $0x58] sm:$0xff]
        %v1770 = vld [vmem:[%s1757 + $0x60] sm:$0xff]
        %v1771 = vld [vmem:[%s1757 + $0x68] sm:$0xff]
        %v1772 = vld [vmem:[%s1757 + $0x70] sm:$0xff]
        %v1773 = vld [vmem:[%s1757 + $0x78] sm:$0xff]
        %v1775 = vsel %vm479, %v1732, 0
        %v1778 = vsel %vm479, %v1737, 0
        %v1781 = vsel %vm479, %v1741, 0
        %v1784 = vsel %vm479, %v1742, 0
        %v1787 = vsel %vm479, %v1743, 0
        %v1790 = vsel %vm479, %v1744, 0
        %v1793 = vsel %vm479, %v1745, 0
        %v1796 = vsel %vm479, %v1746, 0
        %v1799 = vsel %vm479, %v1747, 0
        %v1802 = vsel %vm479, %v1748, 0
        %v1805 = vsel %vm479, %v1749, 0
        %v1808 = vsel %vm479, %v1750, 0
        %v1811 = vsel %vm479, %v1751, 0
        %v1814 = vsel %vm479, %v1752, 0
        %v1817 = vsel %vm479, %v1753, 0
        %v1820 = vsel %vm479, %v1754, 0
        %v1823 = vsel %vm479, %v1755, 0
        %v1826 = vsel %vm479, %v1756, 0
        %1828 = vmatprep.subr.mxu0 0.0
        %1829 = vmatpush1.xpose.msra.mxu0 %v1781
        %1830 = vmatprep.subr.mxu0 0.0
        %1831 = vmatpush1.xpose.msra.mxu0 %v1784
        %1832 = vmatprep.subr.mxu0 0.0
        %1833 = vmatpush1.xpose.msra.mxu0 %v1787
        %1834 = vmatprep.subr.mxu0 0.0
        %1835 = vmatpush1.xpose.msra.mxu0 %v1790
        %1836 = vmatprep.subr.mxu0 0.0
        %1837 = vmatpush1.xpose.msra.mxu0 %v1793
        %1838 = vmatprep.subr.mxu0 0.0
        %1839 = vmatpush1.xpose.msra.mxu0 %v1796
        %1840 = vmatprep.subr.mxu0 0.0
        %1841 = vmatpush1.xpose.msra.mxu0 %v1799
        %1842 = vmatprep.subr.mxu0 0.0
        %1843 = vmatpush1.xpose.msra.mxu0 %v1802
        %1844 = vmatprep.subr.mxu0 0.0
        %1845 = vmatpush1.xpose.msra.mxu0 %v1805
        %1846 = vmatprep.subr.mxu0 0.0
        %1847 = vmatpush1.xpose.msra.mxu0 %v1808
        %1848 = vmatprep.subr.mxu0 0.0
        %1849 = vmatpush1.xpose.msra.mxu0 %v1811
        %1850 = vmatprep.subr.mxu0 0.0
        %1851 = vmatpush1.xpose.msra.mxu0 %v1814
        %1852 = vmatprep.subr.mxu0 0.0
        %1853 = vmatpush1.xpose.msra.mxu0 %v1817
        %1854 = vmatprep.subr.mxu0 0.0
        %1855 = vmatpush1.xpose.msra.mxu0 %v1820
        %1856 = vmatprep.subr.mxu0 0.0
        %1857 = vmatpush1.xpose.msra.mxu0 %v1823
        %1858 = vmatprep.subr.mxu0 0.0
        %1859 = vmatpush1.xpose.msra.mxu0 %v1826
        %1860 = vmatprep.subr.mxu0 0.0
        %1861 = vmatpush1.xpose.msra.mxu0 0.0
        %1862 = vmatprep.subr.mxu0 0.0
        %1863 = vmatpush1.xpose.msra.mxu0 0.0
        %1864 = vmatprep.subr.mxu0 0.0
        %1865 = vmatpush1.xpose.msra.mxu0 0.0
        %1866 = vmatprep.subr.mxu0 0.0
        %1867 = vmatpush1.xpose.msra.mxu0 0.0
        %1868 = vmatprep.subr.mxu0 0.0
        %1869 = vmatpush1.xpose.msra.mxu0 0.0
        %1870 = vmatprep.subr.mxu0 0.0
        %1871 = vmatpush1.xpose.msra.mxu0 0.0
        %1872 = vmatprep.subr.mxu0 0.0
        %1873 = vmatpush1.xpose.msra.mxu0 0.0
        %1874 = vmatprep.subr.mxu0 0.0
        %1875 = vmatpush1.xpose.msra.mxu0 0.0
        %1876 = vmatprep.subr.mxu0 0.0
        %1877 = vmatpush1.xpose.msra.mxu0 0.0
        %1878 = vmatprep.subr.mxu0 0.0
        %1879 = vmatpush1.xpose.msra.mxu0 0.0
        %1880 = vmatprep.subr.mxu0 0.0
        %1881 = vmatpush1.xpose.msra.mxu0 0.0
        %1882 = vmatprep.subr.mxu0 0.0
        %1883 = vmatpush1.xpose.msra.mxu0 0.0
        %1884 = vmatprep.subr.mxu0 0.0
        %1885 = vmatpush1.xpose.msra.mxu0 0.0
        %1886 = vmatprep.subr.mxu0 0.0
        %1887 = vmatpush1.xpose.msra.mxu0 0.0
        %1888 = vmatprep.subr.mxu0 0.0
        %1889 = vmatpush1.xpose.msra.mxu0 0.0
        %1890 = vmatprep.subr.mxu0 0.0
        %1891 = vmatpush1.xpose.msra.mxu0 0.0
        %1892 = vmatprep.mubr.f32.mxu0 0.0
        %1893 = vmatmul.mubr.f32.gmra.mrb[0].mxu0 %v1775
        %v1894 = vpop.f32.mrb[0].mxu0
        %v1895 = vadd.f32 %v353, %v1894
        %v1896 = vpop.f32.mrb[0].mxu0
        %1897 = vmatprep.mubr.f32.mxu0 0.0
        %1898 = vmatmul.mubr.f32.gmra.mrb[0].mxu0 %v1778
        %v1899 = vpop.f32.mrb[0].mxu0
        %v1900 = vadd.f32 %v353, %v1899
        %v1901 = vpop.f32.mrb[0].mxu0
        %1902 = vdwg.mxu0
        %1903 = vmax.xlane.f32.xlu0 %v1895
        %v1904 = vpop.xlane.xlu0 %1903
        %1905 = vmax.xlane.f32.xlu0 %v1900
        %v1906 = vpop.xlane.xlu0 %1905
        %v1907 = vsub.f32 %v1895, %v1904
        %v1908 = vsub.f32 %v1900, %v1906
        %v1909 = vmul.f32 %v1907, 1.442695
        %v1910 = vpow.pop %v1909
        %v1911 = vmul.f32 %v1908, 1.442695
        %v1912 = vpow.pop %v1911
        %1913 = vadd.xlane.f32.xlu0 %v1910
        %v1914 = vpop.xlane.xlu0 %1913
        %1915 = vadd.xlane.f32.xlu0 %v1912
        %v1916 = vpop.xlane.xlu0 %1915
        %v1917 = vrcp.pop %v1914
        %v1918 = vrcp.pop %v1916
        %v1919 = vmul.f32 %v1910, %v1917
        %v1920 = vmul.f32 %v1912, %v1918
        %1921 = vmatprep.subr.mxu0 0.0
        %1922 = vmatpush1.msra.mxu0 %v1758
        %1923 = vmatprep.subr.mxu0 0.0
        %1924 = vmatpush1.msra.mxu0 %v1759
        %1925 = vmatprep.subr.mxu0 0.0
        %1926 = vmatpush1.msra.mxu0 %v1760
        %1927 = vmatprep.subr.mxu0 0.0
        %1928 = vmatpush1.msra.mxu0 %v1761
        %1929 = vmatprep.subr.mxu0 0.0
        %1930 = vmatpush1.msra.mxu0 %v1762
        %1931 = vmatprep.subr.mxu0 0.0
        %1932 = vmatpush1.msra.mxu0 %v1763
        %1933 = vmatprep.subr.mxu0 0.0
        %1934 = vmatpush1.msra.mxu0 %v1764
        %1935 = vmatprep.subr.mxu0 0.0
        %1936 = vmatpush1.msra.mxu0 %v1765
        %1937 = vmatprep.subr.mxu0 0.0
        %1938 = vmatpush1.msra.mxu0 %v1766
        %1939 = vmatprep.subr.mxu0 0.0
        %1940 = vmatpush1.msra.mxu0 %v1767
        %1941 = vmatprep.subr.mxu0 0.0
        %1942 = vmatpush1.msra.mxu0 %v1768
        %1943 = vmatprep.subr.mxu0 0.0
        %1944 = vmatpush1.msra.mxu0 %v1769
        %1945 = vmatprep.subr.mxu0 0.0
        %1946 = vmatpush1.msra.mxu0 %v1770
        %1947 = vmatprep.subr.mxu0 0.0
        %1948 = vmatpush1.msra.mxu0 %v1771
        %1949 = vmatprep.subr.mxu0 0.0
        %1950 = vmatpush1.msra.mxu0 %v1772
        %1951 = vmatprep.subr.mxu0 0.0
        %1952 = vmatpush1.msra.mxu0 %v1773
        %1953 = vmatprep.subr.mxu0 0.0
        %1954 = vmatpush1.msra.mxu0 0.0
        %1955 = vmatprep.subr.mxu0 0.0
        %1956 = vmatpush1.msra.mxu0 0.0
        %1957 = vmatprep.subr.mxu0 0.0
        %1958 = vmatpush1.msra.mxu0 0.0
        %1959 = vmatprep.subr.mxu0 0.0
        %1960 = vmatpush1.msra.mxu0 0.0
        %1961 = vmatprep.subr.mxu0 0.0
        %1962 = vmatpush1.msra.mxu0 0.0
        %1963 = vmatprep.subr.mxu0 0.0
        %1964 = vmatpush1.msra.mxu0 0.0
        %1965 = vmatprep.subr.mxu0 0.0
        %1966 = vmatpush1.msra.mxu0 0.0
        %1967 = vmatprep.subr.mxu0 0.0
        %1968 = vmatpush1.msra.mxu0 0.0
        %1969 = vmatprep.subr.mxu0 0.0
        %1970 = vmatpush1.msra.mxu0 0.0
        %1971 = vmatprep.subr.mxu0 0.0
        %1972 = vmatpush1.msra.mxu0 0.0
        %1973 = vmatprep.subr.mxu0 0.0
        %1974 = vmatpush1.msra.mxu0 0.0
        %1975 = vmatprep.subr.mxu0 0.0
        %1976 = vmatpush1.msra.mxu0 0.0
        %1977 = vmatprep.subr.mxu0 0.0
        %1978 = vmatpush1.msra.mxu0 0.0
        %1979 = vmatprep.subr.mxu0 0.0
        %1980 = vmatpush1.msra.mxu0 0.0
        %1981 = vmatprep.subr.mxu0 0.0
        %1982 = vmatpush1.msra.mxu0 0.0
        %1983 = vmatprep.subr.mxu0 0.0
        %1984 = vmatpush1.msra.mxu0 0.0
        %1985 = vmatprep.mubr.f32.mxu0 0.0
        %1986 = vmatmul.mubr.f32.gmra.mrb[0].mxu0 %v1919
        %v1987 = vpop.f32.mrb[0].mxu0
        %v1988 = vadd.f32 0.0, %v1987
        %v1989 = vpop.f32.mrb[0].mxu0
        %1990 = vmatprep.mubr.f32.mxu0 0.0
        %1991 = vmatmul.mubr.f32.gmra.mrb[0].mxu0 %v1920
        %v1992 = vpop.f32.mrb[0].mxu0
        %v1993 = vadd.f32 0.0, %v1992
        %v1994 = vpop.f32.mrb[0].mxu0
        %1995 = vdwg.mxu0
        %s1996 = scalar_lea.vmem %s5, 24
        %v1997 = vld [vmem:[%s1996] sm:$0xff]
        %v1999 = vsel %vm479, %v1988, 0
        %v2002 = vsel %vm479, %v1993, 0
        %2004 = vmatprep.subr.mxu0 0.0
        %2005 = vmatpush1.msra.mxu0 %v1997
        %2006 = vmatprep.subr.mxu0 0.0
        %2007 = vmatpush1.msra.mxu0 0.0
        %2008 = vmatprep.subr.mxu0 0.0
        %2009 = vmatpush1.msra.mxu0 0.0
        %2010 = vmatprep.subr.mxu0 0.0
        %2011 = vmatpush1.msra.mxu0 0.0
        %2012 = vmatprep.subr.mxu0 0.0
        %2013 = vmatpush1.msra.mxu0 0.0
        %2014 = vmatprep.subr.mxu0 0.0
        %2015 = vmatpush1.msra.mxu0 0.0
        %2016 = vmatprep.subr.mxu0 0.0
        %2017 = vmatpush1.msra.mxu0 0.0
        %2018 = vmatprep.subr.mxu0 0.0
        %2019 = vmatpush1.msra.mxu0 0.0
        %2020 = vmatprep.subr.mxu0 0.0
        %2021 = vmatpush1.msra.mxu0 0.0
        %2022 = vmatprep.subr.mxu0 0.0
        %2023 = vmatpush1.msra.mxu0 0.0
        %2024 = vmatprep.subr.mxu0 0.0
        %2025 = vmatpush1.msra.mxu0 0.0
        %2026 = vmatprep.subr.mxu0 0.0
        %2027 = vmatpush1.msra.mxu0 0.0
        %2028 = vmatprep.subr.mxu0 0.0
        %2029 = vmatpush1.msra.mxu0 0.0
        %2030 = vmatprep.subr.mxu0 0.0
        %2031 = vmatpush1.msra.mxu0 0.0
        %2032 = vmatprep.subr.mxu0 0.0
        %2033 = vmatpush1.msra.mxu0 0.0
        %2034 = vmatprep.subr.mxu0 0.0
        %2035 = vmatpush1.msra.mxu0 0.0
        %2036 = vmatprep.subr.mxu0 0.0
        %2037 = vmatpush1.msra.mxu0 0.0
        %2038 = vmatprep.subr.mxu0 0.0
        %2039 = vmatpush1.msra.mxu0 0.0
        %2040 = vmatprep.subr.mxu0 0.0
        %2041 = vmatpush1.msra.mxu0 0.0
        %2042 = vmatprep.subr.mxu0 0.0
        %2043 = vmatpush1.msra.mxu0 0.0
        %2044 = vmatprep.subr.mxu0 0.0
        %2045 = vmatpush1.msra.mxu0 0.0
        %2046 = vmatprep.subr.mxu0 0.0
        %2047 = vmatpush1.msra.mxu0 0.0
        %2048 = vmatprep.subr.mxu0 0.0
        %2049 = vmatpush1.msra.mxu0 0.0
        %2050 = vmatprep.subr.mxu0 0.0
        %2051 = vmatpush1.msra.mxu0 0.0
        %2052 = vmatprep.subr.mxu0 0.0
        %2053 = vmatpush1.msra.mxu0 0.0
        %2054 = vmatprep.subr.mxu0 0.0
        %2055 = vmatpush1.msra.mxu0 0.0
        %2056 = vmatprep.subr.mxu0 0.0
        %2057 = vmatpush1.msra.mxu0 0.0
        %2058 = vmatprep.subr.mxu0 0.0
        %2059 = vmatpush1.msra.mxu0 0.0
        %2060 = vmatprep.subr.mxu0 0.0
        %2061 = vmatpush1.msra.mxu0 0.0
        %2062 = vmatprep.subr.mxu0 0.0
        %2063 = vmatpush1.msra.mxu0 0.0
        %2064 = vmatprep.subr.mxu0 0.0
        %2065 = vmatpush1.msra.mxu0 0.0
        %2066 = vmatprep.subr.mxu0 0.0
        %2067 = vmatpush1.msra.mxu0 0.0
        %2068 = vmatprep.mubr.f32.mxu0 0.0
        %2069 = vmatmul.mubr.f32.gmra.mrb[0].mxu0 %v1999
        %v2070 = vpop.f32.mrb[0].mxu0
        %v2071 = vadd.f32 0.0, %v2070
        %v2072 = vpop.f32.mrb[0].mxu0
        %2073 = vmatprep.mubr.f32.mxu0 0.0
        %2074 = vmatmul.mubr.f32.gmra.mrb[0].mxu0 %v2002
        %v2075 = vpop.f32.mrb[0].mxu0
        %v2076 = vadd.f32 0.0, %v2075
        %v2077 = vpop.f32.mrb[0].mxu0
        %2078 = vdwg.mxu0
        %v2079 = vld [vmem:[#allocation2] sm:$0xff]
        %v2080 = vld [vmem:[#allocation2 + $0x8] sm:$0xff]
        %v2081 = vadd.f32 %v2079, %v2071
        %v2082 = vadd.f32 %v2080, %v2076
        %2083 = vst.msk [vmem:[#allocation2] sm:$0xff] %vm365, %v2081
        %2084 = vst.msk [vmem:[#allocation2 + $0x8] sm:$0xff] %vm365, %v2082
        %v2085 = vld [vmem:[#allocation2] sm:$0xff]
        %v2086 = vld [vmem:[#allocation2 + $0x8] sm:$0xff]
        %v2087 = vld [vmem:[%s6] sm:$0x1]
        %v2089 = vlaneseq
        %v2090 = vshrl.u32 %v2089, 7
        %v2091 = vsub.s32 0, %v2090
        %v2092 = vrot.slane %v2087, %v2091
        %v2094 = vadd.f32 %v2085, %v2092
        %v2095 = vadd.f32 %v2086, %v2092
        %2096 = vst.msk [vmem:[%s326] sm:$0xff] %vm365, %v2094
        %2097 = vst.msk [vmem:[%s326 + $0x8] sm:$0xff] %vm365, %v2095
        %s2098 = sand.u32 %s207, 1
        %s2099 = scalar_lea.sflag [#allocation4], %s2098
        %s2100 = sand.u32 %s207, 1
        %s2101 = smul.addr %s2100, 16
        %s2102 = scalar_lea.vmem [#allocation3], %s2101
        // Predicated region
        $region49: #{tpu_custom_call.1} parent=47 // pred_check
          %p2103 = pneg %p217
        $region50: #{tpu_custom_call.1} parent=47 // pred_check_branch
          %2105 = sbr.rel (%p2103) target = $region52
        $region51: #{tpu_custom_call.1} parent=47 // pred_region
          %s2106 = smul.u32 2, %s26
          %s2108 = ssub.s32 256, 256
          %2109 = vsyncadd %s2099, %s2108
          %s2110 = smul.addr %s25, 2
          %s2111 = sadd.s32 %s2106, %s2110
          %s2112 = smul.addr %s2111, 128
          %s2113 = scalar_lea.hbm %s7, %s2112
          %s2114 = sshll.u32 %s2102, 4
          %s2115 = int_to_ptr.vmem [resolvable:$true] %s2114
          %2120 = dma.vmem_to_hbm [thread:$0]  %s2115, 256, %s2113, %s2099, 128, 128, 8
        $region52: #{tpu_custom_call.1} parent=47 // pred_fallthru
          _
      $region48: #{tpu_custom_call.1} parent=5 // pred_fallthru
        _
      %p2121 = scmp.le.s32.totalorder 2, %s16
      // Predicated region
      $region53: #{tpu_custom_call.1} parent=5 // pred_check
        %p2122 = pneg %p2121
      $region54: #{tpu_custom_call.1} parent=5 // pred_check_branch
        %2124 = sbr.rel (%p2122) target = $region56
      $region55: #{tpu_custom_call.1} parent=5 // pred_region
        %s2125 = ssub.s32 %s16, 2
        // Predicated region
        $region57: #{tpu_custom_call.1} parent=55 // pred_check
          %p2126 = pneg %p223
        $region58: #{tpu_custom_call.1} parent=55 // pred_check_branch
          %2128 = sbr.rel (%p2126) target = $region60
        $region59: #{tpu_custom_call.1} parent=55 // pred_region
          %s2129 = sand.u32 %s208, 1
          %s2130 = scalar_lea.sflag [#allocation4], %s2129
          %s2131 = sand.u32 %s208, 1
          %s2132 = smul.addr %s2131, 16
          %s2133 = scalar_lea.vmem [#allocation3], %s2132
          %2134 = dma.done %s2130, 256
        $region60: #{tpu_custom_call.1} parent=55 // pred_fallthru
          _
      $region56: #{tpu_custom_call.1} parent=5 // pred_fallthru
        _
    $region6: #{tpu_custom_call.1} parent=1 // loop_footer
      %s20 = sadd.s32 1, %s16
    $region7: #{tpu_custom_call.1} parent=1 // loop_footer_branch
      %15 = sbr.rel target = $region3
    $region8: #{tpu_custom_call.1} parent=1 // loop_exit
      _
    %2135 = vsyncpa [#allocation4], 1
    %s2136 = scalar_lea.sflag [#allocation4], 1
    %2137 = vsyncpa %s2136, 1

</llo_original>
